<compile_context>
chip_gen: v6e
topology: v6e:2x2x1
jax: 0.10.0
libtpu: 0.0.40
codegen_flags: <defaults>
</compile_context>

<pallas_src>
import numpy as np
import jax
import jax.numpy as jnp
from jax.experimental import pallas as pl
from jax.experimental.pallas import tpu as pltpu


# ----------------------------- Pallas kernel --------------------------------
def iafvae_kernel(
    # batch-blocked inputs
    x_ref, eps_ref,
    # resident weights (bf16 matmul weights, f32 biases)
    ew1, eb1, ew2, eb2,          # encoder MLP
    hw, hb,                      # fused heads: [q_mean | q_var | h_context]
    fwz, fbz, fwh, fbh,          # IAF: z->hidden, hidden->hidden (masks & flips pre-applied)
    msw, msb,                    # IAF: fused [mean | gate] output layer (forget bias folded)
    dw1, db1, dw2, db2, pmw, pmb,  # decoder MLP + p_mean head
    # outputs
    xmean_o, slab_o,
):
    f32 = jnp.float32
    bf16 = jnp.bfloat16

    def dot(a, w):
        # bf16 MXU matmul, f32 accumulation.
        return jnp.dot(a.astype(bf16), w, preferred_element_type=f32)

    def relu(v):
        return jnp.maximum(v, 0.0)

    def elu(v):  # torch.nn.ELU, alpha=1
        return jnp.where(v > 0.0, v, jnp.exp(jnp.minimum(v, 0.0)) - 1.0)

    def softplus(v):  # torch softplus, threshold=20
        return jnp.where(v > 20.0, v, jnp.log1p(jnp.exp(jnp.minimum(v, 20.0))))

    def sigmoid(v):
        return 1.0 / (1.0 + jnp.exp(-v))

    x = x_ref[...]                                  # (TB, dim_x), bf16

    # --- encoder MLP (q_nn) ---
    h = relu(dot(x, ew1[...]) + eb1[...])
    h = relu(dot(h, ew2[...]) + eb2[...])

    # --- fused heads: one matmul, slice out the three heads ---
    Dz = fwz.shape[1]
    heads = dot(h, hw[...]) + hb[...]               # (TB, 3*Dz)
    z_mu = heads[:, 0:Dz]
    z_var = softplus(heads[:, Dz:2 * Dz])
    h_ctx = heads[:, 2 * Dz:3 * Dz]

    # --- reparameterize ---
    z0 = z_mu + jnp.sqrt(z_var) * eps_ref[...]

    # --- IAF flows (flips + forget_bias pre-folded into the weights) ---
    z = z0
    ldj = jnp.zeros((z0.shape[0], 1), f32)
    num_flows = fwz.shape[0]
    for k in range(num_flows):                      # static unroll, num_flows is small
        hk = elu(dot(z, fwz[k]) + fbz[k]) + h_ctx
        hk = elu(dot(hk, fwh[k]) + fbh[k])          # num_hidden = 1
        ms = dot(hk, msw[k]) + msb[k]               # (TB, 2*Dz): [mean | gate_pre]
        mean_k = ms[:, 0:Dz]
        s_pre = ms[:, Dz:2 * Dz]
        gate = sigmoid(s_pre)
        z = gate * z + (1.0 - gate) * mean_k
        # log(sigmoid(s)) == -softplus(-s)  (safe, no log(0))
        ldj = ldj - jnp.sum(softplus(-s_pre), axis=1, keepdims=True)

    # --- decoder (p_nn + p_mean) ---
    hd = relu(dot(z, dw1[...]) + db1[...])
    hd = relu(dot(hd, dw2[...]) + db2[...])
    xmean_o[...] = dot(hd, pmw[...]) + pmb[...]

    # --- pack narrow outputs into one lane-dense slab ---
    pad_w = slab_o.shape[1] - (4 * Dz + 1)
    pieces = [z_mu, z_var, z0, z, ldj]
    if pad_w > 0:
        pieces.append(jnp.zeros((z0.shape[0], pad_w), f32))
    slab_o[...] = jnp.concatenate(pieces, axis=1)


# ------------------------------ parameter setup -------------------------------
def made_mask(n, diagonal_zeros):
    """MaskedLinear MADE mask for n_in == n_out == n (h_size == dim_z)."""
    i = np.arange(n)[:, None]
    j = np.arange(n)[None, :]
    m = (i < j) if diagonal_zeros else (i <= j)
    return jnp.asarray(m.astype(np.float32))


def lin_init(key, fan_in, fan_out):
    kw, kb = jax.random.split(key)
    bound = 1.0 / np.sqrt(fan_in)
    w = jax.random.uniform(kw, (fan_in, fan_out), jnp.float32, -bound, bound)
    b = jax.random.uniform(kb, (1, fan_out), jnp.float32, -bound, bound)
    return w, b


def init_params(key, dim_x, dims_x2h, dim_z, dims_z2h, num_flows):
    """Natural (PyTorch-equivalent) parameters; MADE masks pre-applied to flow weights."""
    keys = jax.random.split(key, 32)
    ki = iter(keys)
    p = {}
    p["ew1"], p["eb1"] = lin_init(next(ki), dim_x, dims_x2h[0])
    p["ew2"], p["eb2"] = lin_init(next(ki), dims_x2h[0], dims_x2h[1])
    p["qmw"], p["qmb"] = lin_init(next(ki), dims_x2h[1], dim_z)
    p["qvw"], p["qvb"] = lin_init(next(ki), dims_x2h[1], dim_z)
    p["hcw"], p["hcb"] = lin_init(next(ki), dims_x2h[1], dim_z)   # h_context (h_size = dim_z)
    m_hid = made_mask(dim_z, diagonal_zeros=False)
    m_out = made_mask(dim_z, diagonal_zeros=True)
    wz, bz, wh, bh, wm, bm, ws, bs = [], [], [], [], [], [], [], []
    for _ in range(num_flows):
        w, b = lin_init(next(ki), dim_z, dim_z); wz.append(w * m_hid); bz.append(b)
        w, b = lin_init(next(ki), dim_z, dim_z); wh.append(w * m_hid); bh.append(b)
        w, b = lin_init(next(ki), dim_z, dim_z); wm.append(w * m_out); bm.append(b)
        w, b = lin_init(next(ki), dim_z, dim_z); ws.append(w * m_out); bs.append(b)
    p["fwz"] = jnp.stack(wz); p["fbz"] = jnp.stack(bz)
    p["fwh"] = jnp.stack(wh); p["fbh"] = jnp.stack(bh)
    p["fwm"] = jnp.stack(wm); p["fbm"] = jnp.stack(bm)
    p["fws"] = jnp.stack(ws); p["fbs"] = jnp.stack(bs)
    p["dw1"], p["db1"] = lin_init(next(ki), dim_z, dims_z2h[0])
    p["dw2"], p["db2"] = lin_init(next(ki), dims_z2h[0], dims_z2h[1])
    p["pmw"], p["pmb"] = lin_init(next(ki), dims_z2h[1], dim_x)
    return p


def prepare_kernel_params(p):
    """Fuse heads / mean+gate layers, fold flips & forget_bias, cast matmul weights to bf16.

    Flip folding:  flip(z) @ W == z @ W[::-1, :]   and   flip(h @ W) == h @ W[:, ::-1].
    The kernel always keeps z in the z_0 ordering; the residual output-ordering flip of
    z_k (if the total number of flipping flows is odd) is applied in the wrapper, and the
    first decoder weight's rows are flipped so the decoder consumes z_k in the right order.
    """
    bf16 = jnp.bfloat16
    kp = {}
    kp["ew1"] = p["ew1"].astype(bf16); kp["eb1"] = p["eb1"]
    kp["ew2"] = p["ew2"].astype(bf16); kp["eb2"] = p["eb2"]
    kp["hw"] = jnp.concatenate([p["qmw"], p["qvw"], p["hcw"]], axis=1).astype(bf16)
    kp["hb"] = jnp.concatenate([p["qmb"], p["qvb"], p["hcb"]], axis=1)

    K = p["fwz"].shape[0]
    wz, bz, wh, bh, wms, bms = [], [], [], [], [], []
    for k in range(K):
        f = ((k + 1) // 2) % 2          # parity of cumulative flips through flow k
        Wz, Bz = p["fwz"][k], p["fbz"][k]
        Wh, Bh = p["fwh"][k], p["fbh"][k]
        Wm, Bm = p["fwm"][k], p["fbm"][k]
        Ws, Bs = p["fws"][k], p["fbs"][k] + 1.0   # fold forget_bias = 1.0
        if f:
            Wz = Wz[::-1, :]                       # flipped-z input folded into rows
            Wm = Wm[:, ::-1]; Bm = Bm[:, ::-1]     # flipped outputs folded into cols/bias
            Ws = Ws[:, ::-1]; Bs = Bs[:, ::-1]
        wz.append(Wz); bz.append(Bz)
        wh.append(Wh); bh.append(Bh)
        wms.append(jnp.concatenate([Wm, Ws], axis=1))
        bms.append(jnp.concatenate([Bm, Bs], axis=1))
    kp["fwz"] = jnp.stack(wz).astype(bf16); kp["fbz"] = jnp.stack(bz)
    kp["fwh"] = jnp.stack(wh).astype(bf16); kp["fbh"] = jnp.stack(bh)
    kp["msw"] = jnp.stack(wms).astype(bf16); kp["msb"] = jnp.stack(bms)

    final_flip = (K // 2) % 2
    dw1 = p["dw1"]
    if final_flip:
        dw1 = dw1[::-1, :]                         # decoder consumes z_k in flipped order
    kp["dw1"] = dw1.astype(bf16); kp["db1"] = p["db1"]
    kp["dw2"] = p["dw2"].astype(bf16); kp["db2"] = p["db2"]
    kp["pmw"] = p["pmw"].astype(bf16); kp["pmb"] = p["pmb"]
    kp["final_flip"] = bool(final_flip)
    return kp


_WEIGHT_ORDER = [
    "ew1", "eb1", "ew2", "eb2",
    "hw", "hb",
    "fwz", "fbz", "fwh", "fbh", "msw", "msb",
    "dw1", "db1", "dw2", "db2", "pmw", "pmb",
]


# ------------------------------ glue / wrapper -------------------------------
def iafvae_forward(kparams, x_img, eps):
    """Runs the fused IAFVAE forward Pallas kernel.

    Returns (x_mean, z_mu, z_var, log_det_j, z_0, z_k), mirroring IAFVAE.forward.
    """
    B = x_img.shape[0]
    x = x_img.reshape(B, -1).astype(jnp.bfloat16)   # NCHW -> (B, dim_x), row-major (torch .view)
    dim_x = x.shape[1]
    dim_z = eps.shape[1]
    eps = eps.astype(jnp.float32)

    # Batch tile: largest tile up to 512 rows (well within scoped VMEM on v5e/v6e/v7x).
    TB = min(B, 512)
    grid = (pl.cdiv(B, TB),)
    w_slab = 128 * pl.cdiv(4 * dim_z + 1, 128)       # lane-dense packed small-output slab

    weights = [kparams[k] for k in _WEIGHT_ORDER]

    def _resident(a):                                # full-extent block, constant index map
        nd = a.ndim
        return pl.BlockSpec(a.shape, lambda i, nd=nd: (0,) * nd)

    in_specs = (
        [pl.BlockSpec((TB, dim_x), lambda i: (i, 0)),
         pl.BlockSpec((TB, dim_z), lambda i: (i, 0))]
        + [_resident(a) for a in weights]
    )
    out_specs = (
        pl.BlockSpec((TB, dim_x), lambda i: (i, 0)),
        pl.BlockSpec((TB, w_slab), lambda i: (i, 0)),
    )
    out_shape = (
        jax.ShapeDtypeStruct((B, dim_x), jnp.float32),   # x_mean
        jax.ShapeDtypeStruct((B, w_slab), jnp.float32),  # [z_mu | z_var | z0 | zk | ldj | pad]
    )

    x_mean, slab = pl.pallas_call(
        iafvae_kernel,
        out_shape=out_shape,
        grid=grid,
        in_specs=in_specs,
        out_specs=out_specs,
        compiler_params=pltpu.CompilerParams(dimension_semantics=("parallel",)),
    )(x, eps, *weights)

    z_mu = slab[:, 0:dim_z]
    z_var = slab[:, dim_z:2 * dim_z]
    z0 = slab[:, 2 * dim_z:3 * dim_z]
    zk = slab[:, 3 * dim_z:4 * dim_z]
    ldj = slab[:, 4 * dim_z]
    if kparams["final_flip"]:
        zk = zk[:, ::-1]                              # restore the reference output ordering
    return x_mean, z_mu, z_var, ldj, z0, zk


# ------------------------------ pure-JAX reference ---------------------------
def _reference(params, x_img, eps):
    """Natural-form reference (explicit flips, unfused heads, +1 forget bias), with the
    same bf16-matmul / f32-accumulation precision policy as the kernel."""
    p = params
    B = x_img.shape[0]
    x = x_img.reshape(B, -1)
    bf16 = jnp.bfloat16
    mm = lambda a, w: jnp.dot(a.astype(bf16), w.astype(bf16),
                              preferred_element_type=jnp.float32)
    relu = lambda v: jnp.maximum(v, 0.0)
    elu = lambda v: jnp.where(v > 0, v, jnp.exp(jnp.minimum(v, 0.0)) - 1.0)
    softplus = lambda v: jnp.where(v > 20.0, v, jnp.log1p(jnp.exp(jnp.minimum(v, 20.0))))
    sigmoid = lambda v: 1.0 / (1.0 + jnp.exp(-v))

    h = relu(mm(x, p["ew1"]) + p["eb1"])
    h = relu(mm(h, p["ew2"]) + p["eb2"])
    z_mu = mm(h, p["qmw"]) + p["qmb"]
    z_var = softplus(mm(h, p["qvw"]) + p["qvb"])
    h_ctx = mm(h, p["hcw"]) + p["hcb"]
    z = z_mu + jnp.sqrt(z_var) * eps
    z0 = z
    ldj = jnp.zeros((B,), jnp.float32)
    K = p["fwz"].shape[0]
    for k in range(K):
        if (k + 1) % 2 == 0:
            z = z[:, ::-1]
        hk = elu(mm(z, p["fwz"][k]) + p["fbz"][k]) + h_ctx
        hk = elu(mm(hk, p["fwh"][k]) + p["fbh"][k])
        m = mm(hk, p["fwm"][k]) + p["fbm"][k]
        g = sigmoid(mm(hk, p["fws"][k]) + p["fbs"][k] + 1.0)
        z = g * z + (1.0 - g) * m
        ldj = ldj + jnp.sum(jnp.log(g), axis=1)
    hd = relu(mm(z, p["dw1"]) + p["db1"])
    hd = relu(mm(hd, p["dw2"]) + p["db2"])
    x_mean = mm(hd, p["pmw"]) + p["pmb"]
    return x_mean, z_mu, z_var, ldj, z0, z


# ----------------------------------- main ------------------------------------
if __name__ == "__main__":
    # args implied by the module: arch_type='mlp'
    B, C, H, W = 2, 4, 16, 16
    dim_x = C * H * W                 # 1024
    dims_x2h = [64, 32]               # q_nn_output_dim = 32
    dim_z = 8                         # h_size = dim_z
    dims_z2h = [32, 64]
    num_flows = 2

    key = jax.random.PRNGKey(0)
    kx, keps, kp = jax.random.split(key, 3)
    x = jax.random.normal(kx, (B, C, H, W), jnp.float32)
    eps = jax.random.normal(keps, (B, dim_z), jnp.float32)   # reparameterization noise
    params = init_params(kp, dim_x, dims_x2h, dim_z, dims_z2h, num_flows)
    kparams = prepare_kernel_params(params)

    outs = iafvae_forward(kparams, x, eps)
    outs = jax.block_until_ready(outs)

    refs = _reference(params, x, eps)
    names = ["x_mean", "z_mu", "z_var", "log_det_j", "z_0", "z_k"]
    for n, o, r in zip(names, outs, refs):
        assert o.shape == r.shape, (n, o.shape, r.shape)
        np.testing.assert_allclose(np.asarray(o), np.asarray(r), rtol=2e-2, atol=2e-3)

    print("KERNEL_OK")
</pallas_src>

<mosaic_0001>
module attributes {stable_mosaic.version = 11 : i64} {
  func.func @iafvae_kernel(%arg0: i32, %arg1: memref<2x1024xbf16, #tpu.memory_space<vmem>>, %arg2: memref<2x8xf32, #tpu.memory_space<vmem>>, %arg3: memref<1024x64xbf16, #tpu.memory_space<vmem>>, %arg4: memref<1x64xf32, #tpu.memory_space<vmem>>, %arg5: memref<64x32xbf16, #tpu.memory_space<vmem>>, %arg6: memref<1x32xf32, #tpu.memory_space<vmem>>, %arg7: memref<32x24xbf16, #tpu.memory_space<vmem>>, %arg8: memref<1x24xf32, #tpu.memory_space<vmem>>, %arg9: memref<2x8x8xbf16, #tpu.memory_space<vmem>>, %arg10: memref<2x1x8xf32, #tpu.memory_space<vmem>>, %arg11: memref<2x8x8xbf16, #tpu.memory_space<vmem>>, %arg12: memref<2x1x8xf32, #tpu.memory_space<vmem>>, %arg13: memref<2x8x16xbf16, #tpu.memory_space<vmem>>, %arg14: memref<2x1x16xf32, #tpu.memory_space<vmem>>, %arg15: memref<8x32xbf16, #tpu.memory_space<vmem>>, %arg16: memref<1x32xf32, #tpu.memory_space<vmem>>, %arg17: memref<32x64xbf16, #tpu.memory_space<vmem>>, %arg18: memref<1x64xf32, #tpu.memory_space<vmem>>, %arg19: memref<64x1024xbf16, #tpu.memory_space<vmem>>, %arg20: memref<1x1024xf32, #tpu.memory_space<vmem>>, %arg21: memref<2x1024xf32, #tpu.memory_space<vmem>>, %arg22: memref<2x128xf32, #tpu.memory_space<vmem>>) attributes {dimension_semantics = [#tpu.dimension_semantics<parallel>], iteration_bounds = array<i64: 1>, scalar_prefetch = 0 : i64, scratch_operands = 0 : i64, tpu.core_type = #tpu.core_type<tc>, window_params = [{transform_indices = @transform_0, window_bounds = array<i64: 2, 1024>}, {transform_indices = @transform_1, window_bounds = array<i64: 2, 8>}, {pipeline_mode = #tpu.pipeline_mode<synchronous>, transform_indices = @transform_2, window_bounds = array<i64: 1024, 64>}, {pipeline_mode = #tpu.pipeline_mode<synchronous>, transform_indices = @transform_3, window_bounds = array<i64: 1, 64>}, {pipeline_mode = #tpu.pipeline_mode<synchronous>, transform_indices = @transform_4, window_bounds = array<i64: 64, 32>}, {pipeline_mode = #tpu.pipeline_mode<synchronous>, transform_indices = @transform_5, window_bounds = array<i64: 1, 32>}, {pipeline_mode = #tpu.pipeline_mode<synchronous>, transform_indices = @transform_6, window_bounds = array<i64: 32, 24>}, {pipeline_mode = #tpu.pipeline_mode<synchronous>, transform_indices = @transform_7, window_bounds = array<i64: 1, 24>}, {pipeline_mode = #tpu.pipeline_mode<synchronous>, transform_indices = @transform_8, window_bounds = array<i64: 2, 8, 8>}, {pipeline_mode = #tpu.pipeline_mode<synchronous>, transform_indices = @transform_9, window_bounds = array<i64: 2, 1, 8>}, {pipeline_mode = #tpu.pipeline_mode<synchronous>, transform_indices = @transform_10, window_bounds = array<i64: 2, 8, 8>}, {pipeline_mode = #tpu.pipeline_mode<synchronous>, transform_indices = @transform_11, window_bounds = array<i64: 2, 1, 8>}, {pipeline_mode = #tpu.pipeline_mode<synchronous>, transform_indices = @transform_12, window_bounds = array<i64: 2, 8, 16>}, {pipeline_mode = #tpu.pipeline_mode<synchronous>, transform_indices = @transform_13, window_bounds = array<i64: 2, 1, 16>}, {pipeline_mode = #tpu.pipeline_mode<synchronous>, transform_indices = @transform_14, window_bounds = array<i64: 8, 32>}, {pipeline_mode = #tpu.pipeline_mode<synchronous>, transform_indices = @transform_15, window_bounds = array<i64: 1, 32>}, {pipeline_mode = #tpu.pipeline_mode<synchronous>, transform_indices = @transform_16, window_bounds = array<i64: 32, 64>}, {pipeline_mode = #tpu.pipeline_mode<synchronous>, transform_indices = @transform_17, window_bounds = array<i64: 1, 64>}, {pipeline_mode = #tpu.pipeline_mode<synchronous>, transform_indices = @transform_18, window_bounds = array<i64: 64, 1024>}, {pipeline_mode = #tpu.pipeline_mode<synchronous>, transform_indices = @transform_19, window_bounds = array<i64: 1, 1024>}, {transform_indices = @transform_20, window_bounds = array<i64: 2, 1024>}, {transform_indices = @transform_21, window_bounds = array<i64: 2, 128>}]} {
    %c0 = arith.constant 0 : index
    %c0_0 = arith.constant 0 : index
    %0 = vector.load %arg1[%c0, %c0_0] : memref<2x1024xbf16, #tpu.memory_space<vmem>>, vector<2x1024xbf16>
    %c0_1 = arith.constant 0 : index
    %c0_2 = arith.constant 0 : index
    %1 = vector.load %arg3[%c0_1, %c0_2] : memref<1024x64xbf16, #tpu.memory_space<vmem>>, vector<1024x64xbf16>
    %cst = arith.constant dense<0.000000e+00> : vector<2x64xf32>
    %2 = tpu.matmul %0, %1, %cst {dimension_numbers = #tpu.dot_dimension_numbers<[1], [0], [0], [1], [0, 0, 1, 1], [], []>} : vector<2x1024xbf16>, vector<1024x64xbf16>, vector<2x64xf32> -> vector<2x64xf32>
    %c0_3 = arith.constant 0 : index
    %c0_4 = arith.constant 0 : index
    %3 = vector.load %arg4[%c0_3, %c0_4] : memref<1x64xf32, #tpu.memory_space<vmem>>, vector<1x64xf32>
    %4 = vector.broadcast %3 : vector<1x64xf32> to vector<2x64xf32>
    %5 = arith.addf %2, %4 : vector<2x64xf32>
    %cst_5 = arith.constant 0.000000e+00 : f32
    %6 = vector.broadcast %cst_5 : f32 to vector<2x64xf32>
    %7 = arith.maximumf %5, %6 : vector<2x64xf32>
    %c0_6 = arith.constant 0 : index
    %c0_7 = arith.constant 0 : index
    %8 = vector.load %arg5[%c0_6, %c0_7] : memref<64x32xbf16, #tpu.memory_space<vmem>>, vector<64x32xbf16>
    %9 = arith.truncf %7 : vector<2x64xf32> to vector<2x64xbf16>
    %cst_8 = arith.constant dense<0.000000e+00> : vector<2x32xf32>
    %10 = tpu.matmul %9, %8, %cst_8 {dimension_numbers = #tpu.dot_dimension_numbers<[1], [0], [0], [1], [0, 0, 1, 1], [], []>} : vector<2x64xbf16>, vector<64x32xbf16>, vector<2x32xf32> -> vector<2x32xf32>
    %c0_9 = arith.constant 0 : index
    %c0_10 = arith.constant 0 : index
    %11 = vector.load %arg6[%c0_9, %c0_10] : memref<1x32xf32, #tpu.memory_space<vmem>>, vector<1x32xf32>
    %12 = vector.broadcast %11 : vector<1x32xf32> to vector<2x32xf32>
    %13 = arith.addf %10, %12 : vector<2x32xf32>
    %cst_11 = arith.constant 0.000000e+00 : f32
    %14 = vector.broadcast %cst_11 : f32 to vector<2x32xf32>
    %15 = arith.maximumf %13, %14 : vector<2x32xf32>
    %c0_12 = arith.constant 0 : index
    %c0_13 = arith.constant 0 : index
    %16 = vector.load %arg7[%c0_12, %c0_13] : memref<32x24xbf16, #tpu.memory_space<vmem>>, vector<32x24xbf16>
    %17 = arith.truncf %15 : vector<2x32xf32> to vector<2x32xbf16>
    %cst_14 = arith.constant dense<0.000000e+00> : vector<2x24xf32>
    %18 = tpu.matmul %17, %16, %cst_14 {dimension_numbers = #tpu.dot_dimension_numbers<[1], [0], [0], [1], [0, 0, 1, 1], [], []>} : vector<2x32xbf16>, vector<32x24xbf16>, vector<2x24xf32> -> vector<2x24xf32>
    %c0_15 = arith.constant 0 : index
    %c0_16 = arith.constant 0 : index
    %19 = vector.load %arg8[%c0_15, %c0_16] : memref<1x24xf32, #tpu.memory_space<vmem>>, vector<1x24xf32>
    %20 = vector.broadcast %19 : vector<1x24xf32> to vector<2x24xf32>
    %21 = arith.addf %18, %20 : vector<2x24xf32>
    %22 = vector.extract_strided_slice %21 {offsets = [0, 0], sizes = [2, 8], strides = [1, 1]} : vector<2x24xf32> to vector<2x8xf32>
    %23 = vector.extract_strided_slice %21 {offsets = [0, 8], sizes = [2, 8], strides = [1, 1]} : vector<2x24xf32> to vector<2x8xf32>
    %cst_17 = arith.constant 2.000000e+01 : f32
    %24 = vector.broadcast %cst_17 : f32 to vector<2x8xf32>
    %25 = arith.cmpf ogt, %23, %24 : vector<2x8xf32>
    %cst_18 = arith.constant 2.000000e+01 : f32
    %26 = vector.broadcast %cst_18 : f32 to vector<2x8xf32>
    %27 = arith.minimumf %23, %26 : vector<2x8xf32>
    %28 = math.exp %27 : vector<2x8xf32>
    %29 = math.log1p %28 : vector<2x8xf32>
    %30 = arith.select %25, %23, %29 : vector<2x8xi1>, vector<2x8xf32>
    %31 = vector.extract_strided_slice %21 {offsets = [0, 16], sizes = [2, 8], strides = [1, 1]} : vector<2x24xf32> to vector<2x8xf32>
    %32 = math.sqrt %30 : vector<2x8xf32>
    %c0_19 = arith.constant 0 : index
    %c0_20 = arith.constant 0 : index
    %33 = vector.load %arg2[%c0_19, %c0_20] : memref<2x8xf32, #tpu.memory_space<vmem>>, vector<2x8xf32>
    %34 = arith.mulf %32, %33 : vector<2x8xf32>
    %35 = arith.addf %22, %34 : vector<2x8xf32>
    %cst_21 = arith.constant 0.000000e+00 : f32
    %36 = vector.broadcast %cst_21 : f32 to vector<2x1xf32>
    %c0_22 = arith.constant 0 : index
    %c0_23 = arith.constant 0 : index
    %c0_24 = arith.constant 0 : index
    %37 = vector.load %arg9[%c0_22, %c0_23, %c0_24] : memref<2x8x8xbf16, #tpu.memory_space<vmem>>, vector<1x8x8xbf16>
    %38 = vector.shape_cast %37 : vector<1x8x8xbf16> to vector<8x8xbf16>
    %39 = arith.truncf %35 : vector<2x8xf32> to vector<2x8xbf16>
    %cst_25 = arith.constant dense<0.000000e+00> : vector<2x8xf32>
    %40 = tpu.matmul %39, %38, %cst_25 {dimension_numbers = #tpu.dot_dimension_numbers<[1], [0], [0], [1], [0, 0, 1, 1], [], []>} : vector<2x8xbf16>, vector<8x8xbf16>, vector<2x8xf32> -> vector<2x8xf32>
    %c0_26 = arith.constant 0 : index
    %c0_27 = arith.constant 0 : index
    %c0_28 = arith.constant 0 : index
    %41 = vector.load %arg10[%c0_26, %c0_27, %c0_28] : memref<2x1x8xf32, #tpu.memory_space<vmem>>, vector<1x1x8xf32>
    %42 = vector.shape_cast %41 : vector<1x1x8xf32> to vector<1x8xf32>
    %43 = vector.broadcast %42 : vector<1x8xf32> to vector<2x8xf32>
    %44 = arith.addf %40, %43 : vector<2x8xf32>
    %cst_29 = arith.constant 0.000000e+00 : f32
    %45 = vector.broadcast %cst_29 : f32 to vector<2x8xf32>
    %46 = arith.cmpf ogt, %44, %45 : vector<2x8xf32>
    %cst_30 = arith.constant 0.000000e+00 : f32
    %47 = vector.broadcast %cst_30 : f32 to vector<2x8xf32>
    %48 = arith.minimumf %44, %47 : vector<2x8xf32>
    %49 = math.exp %48 : vector<2x8xf32>
    %cst_31 = arith.constant 1.000000e+00 : f32
    %50 = vector.broadcast %cst_31 : f32 to vector<2x8xf32>
    %51 = arith.subf %49, %50 : vector<2x8xf32>
    %52 = arith.select %46, %44, %51 : vector<2x8xi1>, vector<2x8xf32>
    %53 = arith.addf %52, %31 : vector<2x8xf32>
    %c0_32 = arith.constant 0 : index
    %c0_33 = arith.constant 0 : index
    %c0_34 = arith.constant 0 : index
    %54 = vector.load %arg11[%c0_32, %c0_33, %c0_34] : memref<2x8x8xbf16, #tpu.memory_space<vmem>>, vector<1x8x8xbf16>
    %55 = vector.shape_cast %54 : vector<1x8x8xbf16> to vector<8x8xbf16>
    %56 = arith.truncf %53 : vector<2x8xf32> to vector<2x8xbf16>
    %cst_35 = arith.constant dense<0.000000e+00> : vector<2x8xf32>
    %57 = tpu.matmul %56, %55, %cst_35 {dimension_numbers = #tpu.dot_dimension_numbers<[1], [0], [0], [1], [0, 0, 1, 1], [], []>} : vector<2x8xbf16>, vector<8x8xbf16>, vector<2x8xf32> -> vector<2x8xf32>
    %c0_36 = arith.constant 0 : index
    %c0_37 = arith.constant 0 : index
    %c0_38 = arith.constant 0 : index
    %58 = vector.load %arg12[%c0_36, %c0_37, %c0_38] : memref<2x1x8xf32, #tpu.memory_space<vmem>>, vector<1x1x8xf32>
    %59 = vector.shape_cast %58 : vector<1x1x8xf32> to vector<1x8xf32>
    %60 = vector.broadcast %59 : vector<1x8xf32> to vector<2x8xf32>
    %61 = arith.addf %57, %60 : vector<2x8xf32>
    %cst_39 = arith.constant 0.000000e+00 : f32
    %62 = vector.broadcast %cst_39 : f32 to vector<2x8xf32>
    %63 = arith.cmpf ogt, %61, %62 : vector<2x8xf32>
    %cst_40 = arith.constant 0.000000e+00 : f32
    %64 = vector.broadcast %cst_40 : f32 to vector<2x8xf32>
    %65 = arith.minimumf %61, %64 : vector<2x8xf32>
    %66 = math.exp %65 : vector<2x8xf32>
    %cst_41 = arith.constant 1.000000e+00 : f32
    %67 = vector.broadcast %cst_41 : f32 to vector<2x8xf32>
    %68 = arith.subf %66, %67 : vector<2x8xf32>
    %69 = arith.select %63, %61, %68 : vector<2x8xi1>, vector<2x8xf32>
    %c0_42 = arith.constant 0 : index
    %c0_43 = arith.constant 0 : index
    %c0_44 = arith.constant 0 : index
    %70 = vector.load %arg13[%c0_42, %c0_43, %c0_44] : memref<2x8x16xbf16, #tpu.memory_space<vmem>>, vector<1x8x16xbf16>
    %71 = vector.shape_cast %70 : vector<1x8x16xbf16> to vector<8x16xbf16>
    %72 = arith.truncf %69 : vector<2x8xf32> to vector<2x8xbf16>
    %cst_45 = arith.constant dense<0.000000e+00> : vector<2x16xf32>
    %73 = tpu.matmul %72, %71, %cst_45 {dimension_numbers = #tpu.dot_dimension_numbers<[1], [0], [0], [1], [0, 0, 1, 1], [], []>} : vector<2x8xbf16>, vector<8x16xbf16>, vector<2x16xf32> -> vector<2x16xf32>
    %c0_46 = arith.constant 0 : index
    %c0_47 = arith.constant 0 : index
    %c0_48 = arith.constant 0 : index
    %74 = vector.load %arg14[%c0_46, %c0_47, %c0_48] : memref<2x1x16xf32, #tpu.memory_space<vmem>>, vector<1x1x16xf32>
    %75 = vector.shape_cast %74 : vector<1x1x16xf32> to vector<1x16xf32>
    %76 = vector.broadcast %75 : vector<1x16xf32> to vector<2x16xf32>
    %77 = arith.addf %73, %76 : vector<2x16xf32>
    %78 = vector.extract_strided_slice %77 {offsets = [0, 0], sizes = [2, 8], strides = [1, 1]} : vector<2x16xf32> to vector<2x8xf32>
    %79 = vector.extract_strided_slice %77 {offsets = [0, 8], sizes = [2, 8], strides = [1, 1]} : vector<2x16xf32> to vector<2x8xf32>
    %cst_49 = arith.constant 0.000000e+00 : f32
    %80 = vector.broadcast %cst_49 : f32 to vector<2x8xf32>
    %81 = arith.subf %80, %79 : vector<2x8xf32>
    %82 = math.exp %81 : vector<2x8xf32>
    %cst_50 = arith.constant 1.000000e+00 : f32
    %83 = vector.broadcast %cst_50 : f32 to vector<2x8xf32>
    %84 = arith.addf %83, %82 : vector<2x8xf32>
    %cst_51 = arith.constant 1.000000e+00 : f32
    %85 = vector.broadcast %cst_51 : f32 to vector<2x8xf32>
    %86 = arith.divf %85, %84 : vector<2x8xf32>
    %87 = arith.mulf %86, %35 : vector<2x8xf32>
    %cst_52 = arith.constant 1.000000e+00 : f32
    %88 = vector.broadcast %cst_52 : f32 to vector<2x8xf32>
    %89 = arith.subf %88, %86 : vector<2x8xf32>
    %90 = arith.mulf %89, %78 : vector<2x8xf32>
    %91 = arith.addf %87, %90 : vector<2x8xf32>
    %cst_53 = arith.constant 0.000000e+00 : f32
    %92 = vector.broadcast %cst_53 : f32 to vector<2x8xf32>
    %93 = arith.subf %92, %79 : vector<2x8xf32>
    %cst_54 = arith.constant 2.000000e+01 : f32
    %94 = vector.broadcast %cst_54 : f32 to vector<2x8xf32>
    %95 = arith.cmpf ogt, %93, %94 : vector<2x8xf32>
    %cst_55 = arith.constant 2.000000e+01 : f32
    %96 = vector.broadcast %cst_55 : f32 to vector<2x8xf32>
    %97 = arith.minimumf %93, %96 : vector<2x8xf32>
    %98 = math.exp %97 : vector<2x8xf32>
    %99 = math.log1p %98 : vector<2x8xf32>
    %100 = arith.select %95, %93, %99 : vector<2x8xi1>, vector<2x8xf32>
    %cst_56 = arith.constant dense<0.000000e+00> : vector<2xf32>
    %101 = vector.multi_reduction <add>, %100, %cst_56 [1] : vector<2x8xf32> to vector<2xf32>
    %102 = vector.shape_cast %101 : vector<2xf32> to vector<2x1xf32>
    %103 = arith.subf %36, %102 : vector<2x1xf32>
    %c1 = arith.constant 1 : index
    %c0_57 = arith.constant 0 : index
    %c0_58 = arith.constant 0 : index
    %104 = vector.load %arg9[%c1, %c0_57, %c0_58] : memref<2x8x8xbf16, #tpu.memory_space<vmem>>, vector<1x8x8xbf16>
    %105 = vector.shape_cast %104 : vector<1x8x8xbf16> to vector<8x8xbf16>
    %106 = arith.truncf %91 : vector<2x8xf32> to vector<2x8xbf16>
    %cst_59 = arith.constant dense<0.000000e+00> : vector<2x8xf32>
    %107 = tpu.matmul %106, %105, %cst_59 {dimension_numbers = #tpu.dot_dimension_numbers<[1], [0], [0], [1], [0, 0, 1, 1], [], []>} : vector<2x8xbf16>, vector<8x8xbf16>, vector<2x8xf32> -> vector<2x8xf32>
    %c1_60 = arith.constant 1 : index
    %c0_61 = arith.constant 0 : index
    %c0_62 = arith.constant 0 : index
    %108 = vector.load %arg10[%c1_60, %c0_61, %c0_62] : memref<2x1x8xf32, #tpu.memory_space<vmem>>, vector<1x1x8xf32>
    %109 = vector.shape_cast %108 : vector<1x1x8xf32> to vector<1x8xf32>
    %110 = vector.broadcast %109 : vector<1x8xf32> to vector<2x8xf32>
    %111 = arith.addf %107, %110 : vector<2x8xf32>
    %cst_63 = arith.constant 0.000000e+00 : f32
    %112 = vector.broadcast %cst_63 : f32 to vector<2x8xf32>
    %113 = arith.cmpf ogt, %111, %112 : vector<2x8xf32>
    %cst_64 = arith.constant 0.000000e+00 : f32
    %114 = vector.broadcast %cst_64 : f32 to vector<2x8xf32>
    %115 = arith.minimumf %111, %114 : vector<2x8xf32>
    %116 = math.exp %115 : vector<2x8xf32>
    %cst_65 = arith.constant 1.000000e+00 : f32
    %117 = vector.broadcast %cst_65 : f32 to vector<2x8xf32>
    %118 = arith.subf %116, %117 : vector<2x8xf32>
    %119 = arith.select %113, %111, %118 : vector<2x8xi1>, vector<2x8xf32>
    %120 = arith.addf %119, %31 : vector<2x8xf32>
    %c1_66 = arith.constant 1 : index
    %c0_67 = arith.constant 0 : index
    %c0_68 = arith.constant 0 : index
    %121 = vector.load %arg11[%c1_66, %c0_67, %c0_68] : memref<2x8x8xbf16, #tpu.memory_space<vmem>>, vector<1x8x8xbf16>
    %122 = vector.shape_cast %121 : vector<1x8x8xbf16> to vector<8x8xbf16>
    %123 = arith.truncf %120 : vector<2x8xf32> to vector<2x8xbf16>
    %cst_69 = arith.constant dense<0.000000e+00> : vector<2x8xf32>
    %124 = tpu.matmul %123, %122, %cst_69 {dimension_numbers = #tpu.dot_dimension_numbers<[1], [0], [0], [1], [0, 0, 1, 1], [], []>} : vector<2x8xbf16>, vector<8x8xbf16>, vector<2x8xf32> -> vector<2x8xf32>
    %c1_70 = arith.constant 1 : index
    %c0_71 = arith.constant 0 : index
    %c0_72 = arith.constant 0 : index
    %125 = vector.load %arg12[%c1_70, %c0_71, %c0_72] : memref<2x1x8xf32, #tpu.memory_space<vmem>>, vector<1x1x8xf32>
    %126 = vector.shape_cast %125 : vector<1x1x8xf32> to vector<1x8xf32>
    %127 = vector.broadcast %126 : vector<1x8xf32> to vector<2x8xf32>
    %128 = arith.addf %124, %127 : vector<2x8xf32>
    %cst_73 = arith.constant 0.000000e+00 : f32
    %129 = vector.broadcast %cst_73 : f32 to vector<2x8xf32>
    %130 = arith.cmpf ogt, %128, %129 : vector<2x8xf32>
    %cst_74 = arith.constant 0.000000e+00 : f32
    %131 = vector.broadcast %cst_74 : f32 to vector<2x8xf32>
    %132 = arith.minimumf %128, %131 : vector<2x8xf32>
    %133 = math.exp %132 : vector<2x8xf32>
    %cst_75 = arith.constant 1.000000e+00 : f32
    %134 = vector.broadcast %cst_75 : f32 to vector<2x8xf32>
    %135 = arith.subf %133, %134 : vector<2x8xf32>
    %136 = arith.select %130, %128, %135 : vector<2x8xi1>, vector<2x8xf32>
    %c1_76 = arith.constant 1 : index
    %c0_77 = arith.constant 0 : index
    %c0_78 = arith.constant 0 : index
    %137 = vector.load %arg13[%c1_76, %c0_77, %c0_78] : memref<2x8x16xbf16, #tpu.memory_space<vmem>>, vector<1x8x16xbf16>
    %138 = vector.shape_cast %137 : vector<1x8x16xbf16> to vector<8x16xbf16>
    %139 = arith.truncf %136 : vector<2x8xf32> to vector<2x8xbf16>
    %cst_79 = arith.constant dense<0.000000e+00> : vector<2x16xf32>
    %140 = tpu.matmul %139, %138, %cst_79 {dimension_numbers = #tpu.dot_dimension_numbers<[1], [0], [0], [1], [0, 0, 1, 1], [], []>} : vector<2x8xbf16>, vector<8x16xbf16>, vector<2x16xf32> -> vector<2x16xf32>
    %c1_80 = arith.constant 1 : index
    %c0_81 = arith.constant 0 : index
    %c0_82 = arith.constant 0 : index
    %141 = vector.load %arg14[%c1_80, %c0_81, %c0_82] : memref<2x1x16xf32, #tpu.memory_space<vmem>>, vector<1x1x16xf32>
    %142 = vector.shape_cast %141 : vector<1x1x16xf32> to vector<1x16xf32>
    %143 = vector.broadcast %142 : vector<1x16xf32> to vector<2x16xf32>
    %144 = arith.addf %140, %143 : vector<2x16xf32>
    %145 = vector.extract_strided_slice %144 {offsets = [0, 0], sizes = [2, 8], strides = [1, 1]} : vector<2x16xf32> to vector<2x8xf32>
    %146 = vector.extract_strided_slice %144 {offsets = [0, 8], sizes = [2, 8], strides = [1, 1]} : vector<2x16xf32> to vector<2x8xf32>
    %cst_83 = arith.constant 0.000000e+00 : f32
    %147 = vector.broadcast %cst_83 : f32 to vector<2x8xf32>
    %148 = arith.subf %147, %146 : vector<2x8xf32>
    %149 = math.exp %148 : vector<2x8xf32>
    %cst_84 = arith.constant 1.000000e+00 : f32
    %150 = vector.broadcast %cst_84 : f32 to vector<2x8xf32>
    %151 = arith.addf %150, %149 : vector<2x8xf32>
    %cst_85 = arith.constant 1.000000e+00 : f32
    %152 = vector.broadcast %cst_85 : f32 to vector<2x8xf32>
    %153 = arith.divf %152, %151 : vector<2x8xf32>
    %154 = arith.mulf %153, %91 : vector<2x8xf32>
    %cst_86 = arith.constant 1.000000e+00 : f32
    %155 = vector.broadcast %cst_86 : f32 to vector<2x8xf32>
    %156 = arith.subf %155, %153 : vector<2x8xf32>
    %157 = arith.mulf %156, %145 : vector<2x8xf32>
    %158 = arith.addf %154, %157 : vector<2x8xf32>
    %cst_87 = arith.constant 0.000000e+00 : f32
    %159 = vector.broadcast %cst_87 : f32 to vector<2x8xf32>
    %160 = arith.subf %159, %146 : vector<2x8xf32>
    %cst_88 = arith.constant 2.000000e+01 : f32
    %161 = vector.broadcast %cst_88 : f32 to vector<2x8xf32>
    %162 = arith.cmpf ogt, %160, %161 : vector<2x8xf32>
    %cst_89 = arith.constant 2.000000e+01 : f32
    %163 = vector.broadcast %cst_89 : f32 to vector<2x8xf32>
    %164 = arith.minimumf %160, %163 : vector<2x8xf32>
    %165 = math.exp %164 : vector<2x8xf32>
    %166 = math.log1p %165 : vector<2x8xf32>
    %167 = arith.select %162, %160, %166 : vector<2x8xi1>, vector<2x8xf32>
    %cst_90 = arith.constant dense<0.000000e+00> : vector<2xf32>
    %168 = vector.multi_reduction <add>, %167, %cst_90 [1] : vector<2x8xf32> to vector<2xf32>
    %169 = vector.shape_cast %168 : vector<2xf32> to vector<2x1xf32>
    %170 = arith.subf %103, %169 : vector<2x1xf32>
    %c0_91 = arith.constant 0 : index
    %c0_92 = arith.constant 0 : index
    %171 = vector.load %arg15[%c0_91, %c0_92] : memref<8x32xbf16, #tpu.memory_space<vmem>>, vector<8x32xbf16>
    %172 = arith.truncf %158 : vector<2x8xf32> to vector<2x8xbf16>
    %cst_93 = arith.constant dense<0.000000e+00> : vector<2x32xf32>
    %173 = tpu.matmul %172, %171, %cst_93 {dimension_numbers = #tpu.dot_dimension_numbers<[1], [0], [0], [1], [0, 0, 1, 1], [], []>} : vector<2x8xbf16>, vector<8x32xbf16>, vector<2x32xf32> -> vector<2x32xf32>
    %c0_94 = arith.constant 0 : index
    %c0_95 = arith.constant 0 : index
    %174 = vector.load %arg16[%c0_94, %c0_95] : memref<1x32xf32, #tpu.memory_space<vmem>>, vector<1x32xf32>
    %175 = vector.broadcast %174 : vector<1x32xf32> to vector<2x32xf32>
    %176 = arith.addf %173, %175 : vector<2x32xf32>
    %cst_96 = arith.constant 0.000000e+00 : f32
    %177 = vector.broadcast %cst_96 : f32 to vector<2x32xf32>
    %178 = arith.maximumf %176, %177 : vector<2x32xf32>
    %c0_97 = arith.constant 0 : index
    %c0_98 = arith.constant 0 : index
    %179 = vector.load %arg17[%c0_97, %c0_98] : memref<32x64xbf16, #tpu.memory_space<vmem>>, vector<32x64xbf16>
    %180 = arith.truncf %178 : vector<2x32xf32> to vector<2x32xbf16>
    %cst_99 = arith.constant dense<0.000000e+00> : vector<2x64xf32>
    %181 = tpu.matmul %180, %179, %cst_99 {dimension_numbers = #tpu.dot_dimension_numbers<[1], [0], [0], [1], [0, 0, 1, 1], [], []>} : vector<2x32xbf16>, vector<32x64xbf16>, vector<2x64xf32> -> vector<2x64xf32>
    %c0_100 = arith.constant 0 : index
    %c0_101 = arith.constant 0 : index
    %182 = vector.load %arg18[%c0_100, %c0_101] : memref<1x64xf32, #tpu.memory_space<vmem>>, vector<1x64xf32>
    %183 = vector.broadcast %182 : vector<1x64xf32> to vector<2x64xf32>
    %184 = arith.addf %181, %183 : vector<2x64xf32>
    %cst_102 = arith.constant 0.000000e+00 : f32
    %185 = vector.broadcast %cst_102 : f32 to vector<2x64xf32>
    %186 = arith.maximumf %184, %185 : vector<2x64xf32>
    %c0_103 = arith.constant 0 : index
    %c0_104 = arith.constant 0 : index
    %187 = vector.load %arg19[%c0_103, %c0_104] : memref<64x1024xbf16, #tpu.memory_space<vmem>>, vector<64x1024xbf16>
    %188 = arith.truncf %186 : vector<2x64xf32> to vector<2x64xbf16>
    %cst_105 = arith.constant dense<0.000000e+00> : vector<2x1024xf32>
    %189 = tpu.matmul %188, %187, %cst_105 {dimension_numbers = #tpu.dot_dimension_numbers<[1], [0], [0], [1], [0, 0, 1, 1], [], []>} : vector<2x64xbf16>, vector<64x1024xbf16>, vector<2x1024xf32> -> vector<2x1024xf32>
    %c0_106 = arith.constant 0 : index
    %c0_107 = arith.constant 0 : index
    %190 = vector.load %arg20[%c0_106, %c0_107] : memref<1x1024xf32, #tpu.memory_space<vmem>>, vector<1x1024xf32>
    %191 = vector.broadcast %190 : vector<1x1024xf32> to vector<2x1024xf32>
    %192 = arith.addf %189, %191 : vector<2x1024xf32>
    %c0_108 = arith.constant 0 : index
    %c0_109 = arith.constant 0 : index
    %193 = vector.load %arg21[%c0_108, %c0_109] : memref<2x1024xf32, #tpu.memory_space<vmem>>, vector<2x1024xf32>
    tpu.vector_store %arg21[%c0_108, %c0_109], %192 {strides = array<i32>} : memref<2x1024xf32, #tpu.memory_space<vmem>>, vector<2x1024xf32>,
    %cst_110 = arith.constant 0.000000e+00 : f32
    %194 = vector.broadcast %cst_110 : f32 to vector<2x95xf32>
    %195 = tpu.concatenate %22, %30, %35, %158, %170, %194 in 1 : vector<2x8xf32>, vector<2x8xf32>, vector<2x8xf32>, vector<2x8xf32>, vector<2x1xf32>, vector<2x95xf32> -> vector<2x128xf32>
    %c0_111 = arith.constant 0 : index
    %c0_112 = arith.constant 0 : index
    %196 = vector.load %arg22[%c0_111, %c0_112] : memref<2x128xf32, #tpu.memory_space<vmem>>, vector<2x128xf32>
    tpu.vector_store %arg22[%c0_111, %c0_112], %195 {strides = array<i32>} : memref<2x128xf32, #tpu.memory_space<vmem>>, vector<2x128xf32>,
    return
  }
  func.func @transform_0(%arg0: i32) -> (i32, i32) {
    %c0_i32 = arith.constant 0 : i32
    %c0_i32_0 = arith.constant 0 : i32
    return %arg0, %c0_i32 : i32, i32
  }
  func.func @transform_1(%arg0: i32) -> (i32, i32) {
    %c0_i32 = arith.constant 0 : i32
    %c0_i32_0 = arith.constant 0 : i32
    return %arg0, %c0_i32 : i32, i32
  }
  func.func @transform_2(%arg0: i32) -> (i32, i32) {
    %c0_i32 = arith.constant 0 : i32
    %c0_i32_0 = arith.constant 0 : i32
    %c0_i32_1 = arith.constant 0 : i32
    return %c0_i32, %c0_i32_0 : i32, i32
  }
  func.func @transform_3(%arg0: i32) -> (i32, i32) {
    %c0_i32 = arith.constant 0 : i32
    %c0_i32_0 = arith.constant 0 : i32
    %c0_i32_1 = arith.constant 0 : i32
    return %c0_i32, %c0_i32_0 : i32, i32
  }
  func.func @transform_4(%arg0: i32) -> (i32, i32) {
    %c0_i32 = arith.constant 0 : i32
    %c0_i32_0 = arith.constant 0 : i32
    %c0_i32_1 = arith.constant 0 : i32
    return %c0_i32, %c0_i32_0 : i32, i32
  }
  func.func @transform_5(%arg0: i32) -> (i32, i32) {
    %c0_i32 = arith.constant 0 : i32
    %c0_i32_0 = arith.constant 0 : i32
    %c0_i32_1 = arith.constant 0 : i32
    return %c0_i32, %c0_i32_0 : i32, i32
  }
  func.func @transform_6(%arg0: i32) -> (i32, i32) {
    %c0_i32 = arith.constant 0 : i32
    %c0_i32_0 = arith.constant 0 : i32
    %c0_i32_1 = arith.constant 0 : i32
    return %c0_i32, %c0_i32_0 : i32, i32
  }
  func.func @transform_7(%arg0: i32) -> (i32, i32) {
    %c0_i32 = arith.constant 0 : i32
    %c0_i32_0 = arith.constant 0 : i32
    %c0_i32_1 = arith.constant 0 : i32
    return %c0_i32, %c0_i32_0 : i32, i32
  }
  func.func @transform_8(%arg0: i32) -> (i32, i32, i32) {
    %c0_i32 = arith.constant 0 : i32
    %c0_i32_0 = arith.constant 0 : i32
    %c0_i32_1 = arith.constant 0 : i32
    %c0_i32_2 = arith.constant 0 : i32
    return %c0_i32, %c0_i32_0, %c0_i32_1 : i32, i32, i32
  }
  func.func @transform_9(%arg0: i32) -> (i32, i32, i32) {
    %c0_i32 = arith.constant 0 : i32
    %c0_i32_0 = arith.constant 0 : i32
    %c0_i32_1 = arith.constant 0 : i32
    %c0_i32_2 = arith.constant 0 : i32
    return %c0_i32, %c0_i32_0, %c0_i32_1 : i32, i32, i32
  }
  func.func @transform_10(%arg0: i32) -> (i32, i32, i32) {
    %c0_i32 = arith.constant 0 : i32
    %c0_i32_0 = arith.constant 0 : i32
    %c0_i32_1 = arith.constant 0 : i32
    %c0_i32_2 = arith.constant 0 : i32
    return %c0_i32, %c0_i32_0, %c0_i32_1 : i32, i32, i32
  }
  func.func @transform_11(%arg0: i32) -> (i32, i32, i32) {
    %c0_i32 = arith.constant 0 : i32
    %c0_i32_0 = arith.constant 0 : i32
    %c0_i32_1 = arith.constant 0 : i32
    %c0_i32_2 = arith.constant 0 : i32
    return %c0_i32, %c0_i32_0, %c0_i32_1 : i32, i32, i32
  }
  func.func @transform_12(%arg0: i32) -> (i32, i32, i32) {
    %c0_i32 = arith.constant 0 : i32
    %c0_i32_0 = arith.constant 0 : i32
    %c0_i32_1 = arith.constant 0 : i32
    %c0_i32_2 = arith.constant 0 : i32
    return %c0_i32, %c0_i32_0, %c0_i32_1 : i32, i32, i32
  }
  func.func @transform_13(%arg0: i32) -> (i32, i32, i32) {
    %c0_i32 = arith.constant 0 : i32
    %c0_i32_0 = arith.constant 0 : i32
    %c0_i32_1 = arith.constant 0 : i32
    %c0_i32_2 = arith.constant 0 : i32
    return %c0_i32, %c0_i32_0, %c0_i32_1 : i32, i32, i32
  }
  func.func @transform_14(%arg0: i32) -> (i32, i32) {
    %c0_i32 = arith.constant 0 : i32
    %c0_i32_0 = arith.constant 0 : i32
    %c0_i32_1 = arith.constant 0 : i32
    return %c0_i32, %c0_i32_0 : i32, i32
  }
  func.func @transform_15(%arg0: i32) -> (i32, i32) {
    %c0_i32 = arith.constant 0 : i32
    %c0_i32_0 = arith.constant 0 : i32
    %c0_i32_1 = arith.constant 0 : i32
    return %c0_i32, %c0_i32_0 : i32, i32
  }
  func.func @transform_16(%arg0: i32) -> (i32, i32) {
    %c0_i32 = arith.constant 0 : i32
    %c0_i32_0 = arith.constant 0 : i32
    %c0_i32_1 = arith.constant 0 : i32
    return %c0_i32, %c0_i32_0 : i32, i32
  }
  func.func @transform_17(%arg0: i32) -> (i32, i32) {
    %c0_i32 = arith.constant 0 : i32
    %c0_i32_0 = arith.constant 0 : i32
    %c0_i32_1 = arith.constant 0 : i32
    return %c0_i32, %c0_i32_0 : i32, i32
  }
  func.func @transform_18(%arg0: i32) -> (i32, i32) {
    %c0_i32 = arith.constant 0 : i32
    %c0_i32_0 = arith.constant 0 : i32
    %c0_i32_1 = arith.constant 0 : i32
    return %c0_i32, %c0_i32_0 : i32, i32
  }
  func.func @transform_19(%arg0: i32) -> (i32, i32) {
    %c0_i32 = arith.constant 0 : i32
    %c0_i32_0 = arith.constant 0 : i32
    %c0_i32_1 = arith.constant 0 : i32
    return %c0_i32, %c0_i32_0 : i32, i32
  }
  func.func @transform_20(%arg0: i32) -> (i32, i32) {
    %c0_i32 = arith.constant 0 : i32
    %c0_i32_0 = arith.constant 0 : i32
    return %arg0, %c0_i32 : i32, i32
  }
  func.func @transform_21(%arg0: i32) -> (i32, i32) {
    %c0_i32 = arith.constant 0 : i32
    %c0_i32_0 = arith.constant 0 : i32
    return %arg0, %c0_i32 : i32, i32
  }
}

</mosaic_0001>

<llo_original>
// kernel: tpu_custom_call.1
$region0: #{tpu_custom_call.1}
  #allocation0 [shape = 'u32[]', space=smem, size = 0x4, offset = 0x4, fixed_abs, tag = 'smem constant byte address 0x4 - core index']
  #allocation1 [shape = 'u32[144,128]{1,0:T(1,128)}', space=vmem, size = 0x12000, scoped, tag = 'internal scratch']
  %s0 = inlined_call_operand.vmem [shape: bf16[2,1024], index: 0, kind: input, shape index: {}]
  %s1 = inlined_call_operand.vmem [shape: f32[2,8], index: 1, kind: input, shape index: {}]
  %s2 = inlined_call_operand.vmem [shape: bf16[1024,64], index: 2, kind: input, shape index: {}]
  %s3 = inlined_call_operand.vmem [shape: f32[1,64], index: 3, kind: input, shape index: {}]
  %s4 = inlined_call_operand.vmem [shape: bf16[64,32], index: 4, kind: input, shape index: {}]
  %s5 = inlined_call_operand.vmem [shape: f32[1,32], index: 5, kind: input, shape index: {}]
  %s6 = inlined_call_operand.vmem [shape: bf16[32,24], index: 6, kind: input, shape index: {}]
  %s7 = inlined_call_operand.vmem [shape: f32[1,24], index: 7, kind: input, shape index: {}]
  %s8 = inlined_call_operand.vmem [shape: bf16[2,8,8], index: 8, kind: input, shape index: {}]
  %s9 = inlined_call_operand.vmem [shape: f32[2,1,8], index: 9, kind: input, shape index: {}]
  %s10 = inlined_call_operand.vmem [shape: bf16[2,8,8], index: 10, kind: input, shape index: {}]
  %s11 = inlined_call_operand.vmem [shape: f32[2,1,8], index: 11, kind: input, shape index: {}]
  %s12 = inlined_call_operand.vmem [shape: bf16[2,8,16], index: 12, kind: input, shape index: {}]
  %s13 = inlined_call_operand.vmem [shape: f32[2,1,16], index: 13, kind: input, shape index: {}]
  %s14 = inlined_call_operand.vmem [shape: bf16[8,32], index: 14, kind: input, shape index: {}]
  %s15 = inlined_call_operand.vmem [shape: f32[1,32], index: 15, kind: input, shape index: {}]
  %s16 = inlined_call_operand.vmem [shape: bf16[32,64], index: 16, kind: input, shape index: {}]
  %s17 = inlined_call_operand.vmem [shape: f32[1,64], index: 17, kind: input, shape index: {}]
  %s18 = inlined_call_operand.vmem [shape: bf16[64,1024], index: 18, kind: input, shape index: {}]
  %s19 = inlined_call_operand.vmem [shape: f32[1,1024], index: 19, kind: input, shape index: {}]
  %s20 = inlined_call_operand.hbm [shape: f32[2,1024], index: 20, kind: output, shape index: {0}]
  %s21 = inlined_call_operand.hbm [shape: f32[2,128], index: 21, kind: output, shape index: {1}]
  %22 = xla_tuple %s20, %s21
  %s23 = sld [smem:[#allocation0]]
  $region98: #{tpu_custom_call.1} parent=0
    _
  %s25 = ssub.s32 1, %s23
  %s26 = scalar_select 0, %s25, %s23
  $region1: #{tpu_custom_call.1} parent=0
    #allocation2 [shape = 'u8[8192]{0}', space=vmem, size = 0x2000, scoped, tag = 'output window, operand 0, single buffered']
    #allocation3 [shape = 's32[1]{0}', space=sflag, size = 0x4, scoped, tag = 'scoped memory for tpu_custom_call.1']
    #allocation4 [shape = 'u8[1024]{0}', space=vmem, size = 0x400, scoped, tag = 'output window, operand 1, single buffered']
    #allocation5 [shape = 's32[1]{0}', space=sflag, size = 0x4, scoped, tag = 'scoped memory for tpu_custom_call.1']
    %27 = vsyncpa [#allocation3], 0
    %28 = vsyncpa [#allocation5], 0
    // Predicated region
    $region2: #{tpu_custom_call.1} parent=1 // pred_check
      _
    $region3: #{tpu_custom_call.1} parent=1 // pred_check_branch
      %30 = sbr.rel (0) target = $region5
    $region4: #{tpu_custom_call.1} parent=1 // pred_region
      _
    $region5: #{tpu_custom_call.1} parent=1 // pred_fallthru
      _
    // Predicated region
    $region6: #{tpu_custom_call.1} parent=1 // pred_check
      _
    $region7: #{tpu_custom_call.1} parent=1 // pred_check_branch
      %32 = sbr.rel (0) target = $region9
    $region8: #{tpu_custom_call.1} parent=1 // pred_region
      _
    $region9: #{tpu_custom_call.1} parent=1 // pred_fallthru
      _
    // Predicated region
    $region10: #{tpu_custom_call.1} parent=1 // pred_check
      _
    $region11: #{tpu_custom_call.1} parent=1 // pred_check_branch
      %34 = sbr.rel (0) target = $region13
    $region12: #{tpu_custom_call.1} parent=1 // pred_region
      _
    $region13: #{tpu_custom_call.1} parent=1 // pred_fallthru
      _
    // Predicated region
    $region14: #{tpu_custom_call.1} parent=1 // pred_check
      _
    $region15: #{tpu_custom_call.1} parent=1 // pred_check_branch
      %36 = sbr.rel (0) target = $region17
    $region16: #{tpu_custom_call.1} parent=1 // pred_region
      _
    $region17: #{tpu_custom_call.1} parent=1 // pred_fallthru
      _
    // Predicated region
    $region18: #{tpu_custom_call.1} parent=1 // pred_check
      _
    $region19: #{tpu_custom_call.1} parent=1 // pred_check_branch
      %38 = sbr.rel (0) target = $region21
    $region20: #{tpu_custom_call.1} parent=1 // pred_region
      _
    $region21: #{tpu_custom_call.1} parent=1 // pred_fallthru
      _
    // Predicated region
    $region22: #{tpu_custom_call.1} parent=1 // pred_check
      _
    $region23: #{tpu_custom_call.1} parent=1 // pred_check_branch
      %40 = sbr.rel (0) target = $region25
    $region24: #{tpu_custom_call.1} parent=1 // pred_region
      _
    $region25: #{tpu_custom_call.1} parent=1 // pred_fallthru
      _
    // Predicated region
    $region26: #{tpu_custom_call.1} parent=1 // pred_check
      _
    $region27: #{tpu_custom_call.1} parent=1 // pred_check_branch
      %42 = sbr.rel (0) target = $region29
    $region28: #{tpu_custom_call.1} parent=1 // pred_region
      _
    $region29: #{tpu_custom_call.1} parent=1 // pred_fallthru
      _
    // Predicated region
    $region30: #{tpu_custom_call.1} parent=1 // pred_check
      _
    $region31: #{tpu_custom_call.1} parent=1 // pred_check_branch
      %44 = sbr.rel (0) target = $region33
    $region32: #{tpu_custom_call.1} parent=1 // pred_region
      _
    $region33: #{tpu_custom_call.1} parent=1 // pred_fallthru
      _
    // Predicated region
    $region34: #{tpu_custom_call.1} parent=1 // pred_check
      _
    $region35: #{tpu_custom_call.1} parent=1 // pred_check_branch
      %46 = sbr.rel (0) target = $region37
    $region36: #{tpu_custom_call.1} parent=1 // pred_region
      _
    $region37: #{tpu_custom_call.1} parent=1 // pred_fallthru
      _
    // Predicated region
    $region38: #{tpu_custom_call.1} parent=1 // pred_check
      _
    $region39: #{tpu_custom_call.1} parent=1 // pred_check_branch
      %48 = sbr.rel (0) target = $region41
    $region40: #{tpu_custom_call.1} parent=1 // pred_region
      _
    $region41: #{tpu_custom_call.1} parent=1 // pred_fallthru
      _
    // Predicated region
    $region42: #{tpu_custom_call.1} parent=1 // pred_check
      _
    $region43: #{tpu_custom_call.1} parent=1 // pred_check_branch
      %50 = sbr.rel (0) target = $region45
    $region44: #{tpu_custom_call.1} parent=1 // pred_region
      _
    $region45: #{tpu_custom_call.1} parent=1 // pred_fallthru
      _
    // Predicated region
    $region46: #{tpu_custom_call.1} parent=1 // pred_check
      _
    $region47: #{tpu_custom_call.1} parent=1 // pred_check_branch
      %52 = sbr.rel (0) target = $region49
    $region48: #{tpu_custom_call.1} parent=1 // pred_region
      _
    $region49: #{tpu_custom_call.1} parent=1 // pred_fallthru
      _
    // Predicated region
    $region50: #{tpu_custom_call.1} parent=1 // pred_check
      _
    $region51: #{tpu_custom_call.1} parent=1 // pred_check_branch
      %54 = sbr.rel (0) target = $region53
    $region52: #{tpu_custom_call.1} parent=1 // pred_region
      _
    $region53: #{tpu_custom_call.1} parent=1 // pred_fallthru
      _
    // Predicated region
    $region54: #{tpu_custom_call.1} parent=1 // pred_check
      _
    $region55: #{tpu_custom_call.1} parent=1 // pred_check_branch
      %56 = sbr.rel (0) target = $region57
    $region56: #{tpu_custom_call.1} parent=1 // pred_region
      _
    $region57: #{tpu_custom_call.1} parent=1 // pred_fallthru
      _
    // Predicated region
    $region58: #{tpu_custom_call.1} parent=1 // pred_check
      _
    $region59: #{tpu_custom_call.1} parent=1 // pred_check_branch
      %58 = sbr.rel (0) target = $region61
    $region60: #{tpu_custom_call.1} parent=1 // pred_region
      _
    $region61: #{tpu_custom_call.1} parent=1 // pred_fallthru
      _
    // Predicated region
    $region62: #{tpu_custom_call.1} parent=1 // pred_check
      _
    $region63: #{tpu_custom_call.1} parent=1 // pred_check_branch
      %60 = sbr.rel (0) target = $region65
    $region64: #{tpu_custom_call.1} parent=1 // pred_region
      _
    $region65: #{tpu_custom_call.1} parent=1 // pred_fallthru
      _
    // Predicated region
    $region66: #{tpu_custom_call.1} parent=1 // pred_check
      _
    $region67: #{tpu_custom_call.1} parent=1 // pred_check_branch
      %62 = sbr.rel (0) target = $region69
    $region68: #{tpu_custom_call.1} parent=1 // pred_region
      _
    $region69: #{tpu_custom_call.1} parent=1 // pred_fallthru
      _
    // Predicated region
    $region70: #{tpu_custom_call.1} parent=1 // pred_check
      _
    $region71: #{tpu_custom_call.1} parent=1 // pred_check_branch
      %64 = sbr.rel (0) target = $region73
    $region72: #{tpu_custom_call.1} parent=1 // pred_region
      _
    $region73: #{tpu_custom_call.1} parent=1 // pred_fallthru
      _
    // Predicated region
    $region74: #{tpu_custom_call.1} parent=1 // pred_check
      _
    $region75: #{tpu_custom_call.1} parent=1 // pred_check_branch
      %66 = sbr.rel (0) target = $region77
    $region76: #{tpu_custom_call.1} parent=1 // pred_region
      _
    $region77: #{tpu_custom_call.1} parent=1 // pred_fallthru
      _
    // Predicated region
    $region78: #{tpu_custom_call.1} parent=1 // pred_check
      _
    $region79: #{tpu_custom_call.1} parent=1 // pred_check_branch
      %68 = sbr.rel (0) target = $region81
    $region80: #{tpu_custom_call.1} parent=1 // pred_region
      _
    $region81: #{tpu_custom_call.1} parent=1 // pred_fallthru
      _
    %v70 = vld [vmem:[%s0] sm:$0xff]
    %v71 = vld [vmem:[%s2] sm:$0xf]
    %v72 = vld [vmem:[%s2 + $0x4] sm:$0xf]
    %v73 = vld [vmem:[%s2 + $0x8] sm:$0xf]
    %v74 = vld [vmem:[%s2 + $0xc] sm:$0xf]
    %v75 = vld [vmem:[%s2 + $0x10] sm:$0xf]
    %v76 = vld [vmem:[%s2 + $0x14] sm:$0xf]
    %v77 = vld [vmem:[%s2 + $0x18] sm:$0xf]
    %v78 = vld [vmem:[%s2 + $0x1c] sm:$0xf]
    %v79 = vld [vmem:[%s2 + $0x20] sm:$0xf]
    %v80 = vld [vmem:[%s2 + $0x24] sm:$0xf]
    %v81 = vld [vmem:[%s2 + $0x28] sm:$0xf]
    %v82 = vld [vmem:[%s2 + $0x2c] sm:$0xf]
    %v83 = vld [vmem:[%s2 + $0x30] sm:$0xf]
    %v84 = vld [vmem:[%s2 + $0x34] sm:$0xf]
    %v85 = vld [vmem:[%s2 + $0x38] sm:$0xf]
    %v86 = vld [vmem:[%s2 + $0x3c] sm:$0xf]
    %v87 = vld [vmem:[%s2 + $0x40] sm:$0xf]
    %v88 = vld [vmem:[%s2 + $0x44] sm:$0xf]
    %v89 = vld [vmem:[%s2 + $0x48] sm:$0xf]
    %v90 = vld [vmem:[%s2 + $0x4c] sm:$0xf]
    %v91 = vld [vmem:[%s2 + $0x50] sm:$0xf]
    %v92 = vld [vmem:[%s2 + $0x54] sm:$0xf]
    %v93 = vld [vmem:[%s2 + $0x58] sm:$0xf]
    %v94 = vld [vmem:[%s2 + $0x5c] sm:$0xf]
    %v95 = vld [vmem:[%s2 + $0x60] sm:$0xf]
    %v96 = vld [vmem:[%s2 + $0x64] sm:$0xf]
    %v97 = vld [vmem:[%s2 + $0x68] sm:$0xf]
    %v98 = vld [vmem:[%s2 + $0x6c] sm:$0xf]
    %v99 = vld [vmem:[%s2 + $0x70] sm:$0xf]
    %v100 = vld [vmem:[%s2 + $0x74] sm:$0xf]
    %v101 = vld [vmem:[%s2 + $0x78] sm:$0xf]
    %v102 = vld [vmem:[%s2 + $0x7c] sm:$0xf]
    %v103 = vld [vmem:[%s2 + $0x80] sm:$0xf]
    %v104 = vld [vmem:[%s2 + $0x84] sm:$0xf]
    %v105 = vld [vmem:[%s2 + $0x88] sm:$0xf]
    %v106 = vld [vmem:[%s2 + $0x8c] sm:$0xf]
    %v107 = vld [vmem:[%s2 + $0x90] sm:$0xf]
    %v108 = vld [vmem:[%s2 + $0x94] sm:$0xf]
    %v109 = vld [vmem:[%s2 + $0x98] sm:$0xf]
    %v110 = vld [vmem:[%s2 + $0x9c] sm:$0xf]
    %v111 = vld [vmem:[%s2 + $0xa0] sm:$0xf]
    %v112 = vld [vmem:[%s2 + $0xa4] sm:$0xf]
    %v113 = vld [vmem:[%s2 + $0xa8] sm:$0xf]
    %v114 = vld [vmem:[%s2 + $0xac] sm:$0xf]
    %v115 = vld [vmem:[%s2 + $0xb0] sm:$0xf]
    %v116 = vld [vmem:[%s2 + $0xb4] sm:$0xf]
    %v117 = vld [vmem:[%s2 + $0xb8] sm:$0xf]
    %v118 = vld [vmem:[%s2 + $0xbc] sm:$0xf]
    %v119 = vld [vmem:[%s2 + $0xc0] sm:$0xf]
    %v120 = vld [vmem:[%s2 + $0xc4] sm:$0xf]
    %v121 = vld [vmem:[%s2 + $0xc8] sm:$0xf]
    %v122 = vld [vmem:[%s2 + $0xcc] sm:$0xf]
    %v123 = vld [vmem:[%s2 + $0xd0] sm:$0xf]
    %v124 = vld [vmem:[%s2 + $0xd4] sm:$0xf]
    %v125 = vld [vmem:[%s2 + $0xd8] sm:$0xf]
    %v126 = vld [vmem:[%s2 + $0xdc] sm:$0xf]
    %v127 = vld [vmem:[%s2 + $0xe0] sm:$0xf]
    %v128 = vld [vmem:[%s2 + $0xe4] sm:$0xf]
    %v129 = vld [vmem:[%s2 + $0xe8] sm:$0xf]
    %v130 = vld [vmem:[%s2 + $0xec] sm:$0xf]
    %v131 = vld [vmem:[%s2 + $0xf0] sm:$0xf]
    %v132 = vld [vmem:[%s2 + $0xf4] sm:$0xf]
    %v133 = vld [vmem:[%s2 + $0xf8] sm:$0xf]
    %v134 = vld [vmem:[%s2 + $0xfc] sm:$0xf]
    %v135 = vld [vmem:[%s2 + $0x100] sm:$0xf]
    %v136 = vld [vmem:[%s2 + $0x104] sm:$0xf]
    %v137 = vld [vmem:[%s2 + $0x108] sm:$0xf]
    %v138 = vld [vmem:[%s2 + $0x10c] sm:$0xf]
    %v139 = vld [vmem:[%s2 + $0x110] sm:$0xf]
    %v140 = vld [vmem:[%s2 + $0x114] sm:$0xf]
    %v141 = vld [vmem:[%s2 + $0x118] sm:$0xf]
    %v142 = vld [vmem:[%s2 + $0x11c] sm:$0xf]
    %v143 = vld [vmem:[%s2 + $0x120] sm:$0xf]
    %v144 = vld [vmem:[%s2 + $0x124] sm:$0xf]
    %v145 = vld [vmem:[%s2 + $0x128] sm:$0xf]
    %v146 = vld [vmem:[%s2 + $0x12c] sm:$0xf]
    %v147 = vld [vmem:[%s2 + $0x130] sm:$0xf]
    %v148 = vld [vmem:[%s2 + $0x134] sm:$0xf]
    %v149 = vld [vmem:[%s2 + $0x138] sm:$0xf]
    %v150 = vld [vmem:[%s2 + $0x13c] sm:$0xf]
    %v151 = vld [vmem:[%s2 + $0x140] sm:$0xf]
    %v152 = vld [vmem:[%s2 + $0x144] sm:$0xf]
    %v153 = vld [vmem:[%s2 + $0x148] sm:$0xf]
    %v154 = vld [vmem:[%s2 + $0x14c] sm:$0xf]
    %v155 = vld [vmem:[%s2 + $0x150] sm:$0xf]
    %v156 = vld [vmem:[%s2 + $0x154] sm:$0xf]
    %v157 = vld [vmem:[%s2 + $0x158] sm:$0xf]
    %v158 = vld [vmem:[%s2 + $0x15c] sm:$0xf]
    %v159 = vld [vmem:[%s2 + $0x160] sm:$0xf]
    %v160 = vld [vmem:[%s2 + $0x164] sm:$0xf]
    %v161 = vld [vmem:[%s2 + $0x168] sm:$0xf]
    %v162 = vld [vmem:[%s2 + $0x16c] sm:$0xf]
    %v163 = vld [vmem:[%s2 + $0x170] sm:$0xf]
    %v164 = vld [vmem:[%s2 + $0x174] sm:$0xf]
    %v165 = vld [vmem:[%s2 + $0x178] sm:$0xf]
    %v166 = vld [vmem:[%s2 + $0x17c] sm:$0xf]
    %v167 = vld [vmem:[%s2 + $0x180] sm:$0xf]
    %v168 = vld [vmem:[%s2 + $0x184] sm:$0xf]
    %v169 = vld [vmem:[%s2 + $0x188] sm:$0xf]
    %v170 = vld [vmem:[%s2 + $0x18c] sm:$0xf]
    %v171 = vld [vmem:[%s2 + $0x190] sm:$0xf]
    %v172 = vld [vmem:[%s2 + $0x194] sm:$0xf]
    %v173 = vld [vmem:[%s2 + $0x198] sm:$0xf]
    %v174 = vld [vmem:[%s2 + $0x19c] sm:$0xf]
    %v175 = vld [vmem:[%s2 + $0x1a0] sm:$0xf]
    %v176 = vld [vmem:[%s2 + $0x1a4] sm:$0xf]
    %v177 = vld [vmem:[%s2 + $0x1a8] sm:$0xf]
    %v178 = vld [vmem:[%s2 + $0x1ac] sm:$0xf]
    %v179 = vld [vmem:[%s2 + $0x1b0] sm:$0xf]
    %v180 = vld [vmem:[%s2 + $0x1b4] sm:$0xf]
    %v181 = vld [vmem:[%s2 + $0x1b8] sm:$0xf]
    %v182 = vld [vmem:[%s2 + $0x1bc] sm:$0xf]
    %v183 = vld [vmem:[%s2 + $0x1c0] sm:$0xf]
    %v184 = vld [vmem:[%s2 + $0x1c4] sm:$0xf]
    %v185 = vld [vmem:[%s2 + $0x1c8] sm:$0xf]
    %v186 = vld [vmem:[%s2 + $0x1cc] sm:$0xf]
    %v187 = vld [vmem:[%s2 + $0x1d0] sm:$0xf]
    %v188 = vld [vmem:[%s2 + $0x1d4] sm:$0xf]
    %v189 = vld [vmem:[%s2 + $0x1d8] sm:$0xf]
    %v190 = vld [vmem:[%s2 + $0x1dc] sm:$0xf]
    %v191 = vld [vmem:[%s2 + $0x1e0] sm:$0xf]
    %v192 = vld [vmem:[%s2 + $0x1e4] sm:$0xf]
    %v193 = vld [vmem:[%s2 + $0x1e8] sm:$0xf]
    %v194 = vld [vmem:[%s2 + $0x1ec] sm:$0xf]
    %v195 = vld [vmem:[%s2 + $0x1f0] sm:$0xf]
    %v196 = vld [vmem:[%s2 + $0x1f4] sm:$0xf]
    %v197 = vld [vmem:[%s2 + $0x1f8] sm:$0xf]
    %v198 = vld [vmem:[%s2 + $0x1fc] sm:$0xf]
    %v199 = vld [vmem:[%s3] sm:$0x1]
    %v201 = vlaneseq
    %v202 = vshrl.u32 %v201, 7
    %v203 = vsub.s32 0, %v202
    %v204 = vrot.slane %v199, %v203
    %v207 = vcombine.high %v70, %v70
    %v209 = vunpack.c.l.s4 1966171168
    %v210 = vunpack.c.0.s8 %v209
    %v211 = vlaneseq
    %v212 = vshrl.u32 %v211, 7
    %v213 = vsub.s32 %v210, %v212
    %v214 = vrot.slane %v70, %v213
    %v216 = vunpack.c.l.s4 1966171168
    %v217 = vunpack.c.0.s8 %v216
    %v218 = vlaneseq
    %v219 = vshrl.u32 %v218, 7
    %v220 = vsub.s32 %v217, %v219
    %v221 = vrot.slane %v207, %v220
    %v222 = vcombine.high %v214, %v214
    %v223 = vcombine.high %v221, %v221
    %v225 = vunpack.c.l.s4 1966171168
    %v226 = vunpack.c.0.s8 %v225
    %v227 = vlaneseq
    %v228 = vshrl.u32 %v227, 7
    %v229 = vsub.s32 %v226, %v228
    %v230 = vrot.slane %v214, %v229
    %v232 = vunpack.c.l.s4 1966171168
    %v233 = vunpack.c.0.s8 %v232
    %v234 = vlaneseq
    %v235 = vshrl.u32 %v234, 7
    %v236 = vsub.s32 %v233, %v235
    %v237 = vrot.slane %v221, %v236
    %v239 = vunpack.c.l.s4 1966171168
    %v240 = vunpack.c.0.s8 %v239
    %v241 = vlaneseq
    %v242 = vshrl.u32 %v241, 7
    %v243 = vsub.s32 %v240, %v242
    %v244 = vrot.slane %v222, %v243
    %v246 = vunpack.c.l.s4 1966171168
    %v247 = vunpack.c.0.s8 %v246
    %v248 = vlaneseq
    %v249 = vshrl.u32 %v248, 7
    %v250 = vsub.s32 %v247, %v249
    %v251 = vrot.slane %v223, %v250
    %v252 = vcombine.high %v230, %v230
    %v253 = vcombine.high %v237, %v237
    %v254 = vcombine.high %v244, %v244
    %v255 = vcombine.high %v251, %v251
    %v392 = vunpack.c.l.b16 %v71
    %v393 = vunpack.c.l.b16 %v72
    %v394 = vunpack.c.l.b16 %v73
    %v395 = vunpack.c.l.b16 %v74
    %v396 = vunpack.c.l.b16 %v75
    %v397 = vunpack.c.l.b16 %v76
    %v398 = vunpack.c.l.b16 %v77
    %v399 = vunpack.c.l.b16 %v78
    %v400 = vunpack.c.l.b16 %v79
    %v401 = vunpack.c.l.b16 %v80
    %v402 = vunpack.c.l.b16 %v81
    %v403 = vunpack.c.l.b16 %v82
    %v404 = vunpack.c.l.b16 %v83
    %v405 = vunpack.c.l.b16 %v84
    %v406 = vunpack.c.l.b16 %v85
    %v407 = vunpack.c.l.b16 %v86
    %v408 = vunpack.c.l.b16 %v87
    %v409 = vunpack.c.l.b16 %v88
    %v410 = vunpack.c.l.b16 %v89
    %v411 = vunpack.c.l.b16 %v90
    %v412 = vunpack.c.l.b16 %v91
    %v413 = vunpack.c.l.b16 %v92
    %v414 = vunpack.c.l.b16 %v93
    %v415 = vunpack.c.l.b16 %v94
    %v416 = vunpack.c.l.b16 %v95
    %v417 = vunpack.c.l.b16 %v96
    %v418 = vunpack.c.l.b16 %v97
    %v419 = vunpack.c.l.b16 %v98
    %v420 = vunpack.c.l.b16 %v99
    %v421 = vunpack.c.l.b16 %v100
    %v422 = vunpack.c.l.b16 %v101
    %v423 = vunpack.c.l.b16 %v102
    %v424 = vunpack.c.l.b16 %v103
    %v425 = vunpack.c.l.b16 %v104
    %v426 = vunpack.c.l.b16 %v105
    %v427 = vunpack.c.l.b16 %v106
    %v428 = vunpack.c.l.b16 %v107
    %v429 = vunpack.c.l.b16 %v108
    %v430 = vunpack.c.l.b16 %v109
    %v431 = vunpack.c.l.b16 %v110
    %v432 = vunpack.c.l.b16 %v111
    %v433 = vunpack.c.l.b16 %v112
    %v434 = vunpack.c.l.b16 %v113
    %v435 = vunpack.c.l.b16 %v114
    %v436 = vunpack.c.l.b16 %v115
    %v437 = vunpack.c.l.b16 %v116
    %v438 = vunpack.c.l.b16 %v117
    %v439 = vunpack.c.l.b16 %v118
    %v440 = vunpack.c.l.b16 %v119
    %v441 = vunpack.c.l.b16 %v120
    %v442 = vunpack.c.l.b16 %v121
    %v443 = vunpack.c.l.b16 %v122
    %v444 = vunpack.c.l.b16 %v123
    %v445 = vunpack.c.l.b16 %v124
    %v446 = vunpack.c.l.b16 %v125
    %v447 = vunpack.c.l.b16 %v126
    %v448 = vunpack.c.l.b16 %v127
    %v449 = vunpack.c.l.b16 %v128
    %v450 = vunpack.c.l.b16 %v129
    %v451 = vunpack.c.l.b16 %v130
    %v452 = vunpack.c.l.b16 %v131
    %v453 = vunpack.c.l.b16 %v132
    %v454 = vunpack.c.l.b16 %v133
    %v455 = vunpack.c.l.b16 %v134
    %v456 = vunpack.c.l.b16 %v135
    %v457 = vunpack.c.l.b16 %v136
    %v458 = vunpack.c.l.b16 %v137
    %v459 = vunpack.c.l.b16 %v138
    %v460 = vunpack.c.l.b16 %v139
    %v461 = vunpack.c.l.b16 %v140
    %v462 = vunpack.c.l.b16 %v141
    %v463 = vunpack.c.l.b16 %v142
    %v464 = vunpack.c.l.b16 %v143
    %v465 = vunpack.c.l.b16 %v144
    %v466 = vunpack.c.l.b16 %v145
    %v467 = vunpack.c.l.b16 %v146
    %v468 = vunpack.c.l.b16 %v147
    %v469 = vunpack.c.l.b16 %v148
    %v470 = vunpack.c.l.b16 %v149
    %v471 = vunpack.c.l.b16 %v150
    %v472 = vunpack.c.l.b16 %v151
    %v473 = vunpack.c.l.b16 %v152
    %v474 = vunpack.c.l.b16 %v153
    %v475 = vunpack.c.l.b16 %v154
    %v476 = vunpack.c.l.b16 %v155
    %v477 = vunpack.c.l.b16 %v156
    %v478 = vunpack.c.l.b16 %v157
    %v479 = vunpack.c.l.b16 %v158
    %v480 = vunpack.c.l.b16 %v159
    %v481 = vunpack.c.l.b16 %v160
    %v482 = vunpack.c.l.b16 %v161
    %v483 = vunpack.c.l.b16 %v162
    %v484 = vunpack.c.l.b16 %v163
    %v485 = vunpack.c.l.b16 %v164
    %v486 = vunpack.c.l.b16 %v165
    %v487 = vunpack.c.l.b16 %v166
    %v488 = vunpack.c.l.b16 %v167
    %v489 = vunpack.c.l.b16 %v168
    %v490 = vunpack.c.l.b16 %v169
    %v491 = vunpack.c.l.b16 %v170
    %v492 = vunpack.c.l.b16 %v171
    %v493 = vunpack.c.l.b16 %v172
    %v494 = vunpack.c.l.b16 %v173
    %v495 = vunpack.c.l.b16 %v174
    %v496 = vunpack.c.l.b16 %v175
    %v497 = vunpack.c.l.b16 %v176
    %v498 = vunpack.c.l.b16 %v177
    %v499 = vunpack.c.l.b16 %v178
    %v500 = vunpack.c.l.b16 %v179
    %v501 = vunpack.c.l.b16 %v180
    %v502 = vunpack.c.l.b16 %v181
    %v503 = vunpack.c.l.b16 %v182
    %v504 = vunpack.c.l.b16 %v183
    %v505 = vunpack.c.l.b16 %v184
    %v506 = vunpack.c.l.b16 %v185
    %v507 = vunpack.c.l.b16 %v186
    %v508 = vunpack.c.l.b16 %v187
    %v509 = vunpack.c.l.b16 %v188
    %v510 = vunpack.c.l.b16 %v189
    %v511 = vunpack.c.l.b16 %v190
    %v512 = vunpack.c.l.b16 %v191
    %v513 = vunpack.c.l.b16 %v192
    %v514 = vunpack.c.l.b16 %v193
    %v515 = vunpack.c.l.b16 %v194
    %v516 = vunpack.c.l.b16 %v195
    %v517 = vunpack.c.l.b16 %v196
    %v518 = vunpack.c.l.b16 %v197
    %v519 = vunpack.c.l.b16 %v198
    %v520 = vpack.c.b16 %v393, %v392
    %v521 = vpack.c.b16 %v395, %v394
    %v522 = vpack.c.b16 %v397, %v396
    %v523 = vpack.c.b16 %v399, %v398
    %v524 = vpack.c.b16 %v401, %v400
    %v525 = vpack.c.b16 %v403, %v402
    %v526 = vpack.c.b16 %v405, %v404
    %v527 = vpack.c.b16 %v407, %v406
    %v528 = vpack.c.b16 %v409, %v408
    %v529 = vpack.c.b16 %v411, %v410
    %v530 = vpack.c.b16 %v413, %v412
    %v531 = vpack.c.b16 %v415, %v414
    %v532 = vpack.c.b16 %v417, %v416
    %v533 = vpack.c.b16 %v419, %v418
    %v534 = vpack.c.b16 %v421, %v420
    %v535 = vpack.c.b16 %v423, %v422
    %v536 = vpack.c.b16 %v425, %v424
    %v537 = vpack.c.b16 %v427, %v426
    %v538 = vpack.c.b16 %v429, %v428
    %v539 = vpack.c.b16 %v431, %v430
    %v540 = vpack.c.b16 %v433, %v432
    %v541 = vpack.c.b16 %v435, %v434
    %v542 = vpack.c.b16 %v437, %v436
    %v543 = vpack.c.b16 %v439, %v438
    %v544 = vpack.c.b16 %v441, %v440
    %v545 = vpack.c.b16 %v443, %v442
    %v546 = vpack.c.b16 %v445, %v444
    %v547 = vpack.c.b16 %v447, %v446
    %v548 = vpack.c.b16 %v449, %v448
    %v549 = vpack.c.b16 %v451, %v450
    %v550 = vpack.c.b16 %v453, %v452
    %v551 = vpack.c.b16 %v455, %v454
    %v552 = vpack.c.b16 %v457, %v456
    %v553 = vpack.c.b16 %v459, %v458
    %v554 = vpack.c.b16 %v461, %v460
    %v555 = vpack.c.b16 %v463, %v462
    %v556 = vpack.c.b16 %v465, %v464
    %v557 = vpack.c.b16 %v467, %v466
    %v558 = vpack.c.b16 %v469, %v468
    %v559 = vpack.c.b16 %v471, %v470
    %v560 = vpack.c.b16 %v473, %v472
    %v561 = vpack.c.b16 %v475, %v474
    %v562 = vpack.c.b16 %v477, %v476
    %v563 = vpack.c.b16 %v479, %v478
    %v564 = vpack.c.b16 %v481, %v480
    %v565 = vpack.c.b16 %v483, %v482
    %v566 = vpack.c.b16 %v485, %v484
    %v567 = vpack.c.b16 %v487, %v486
    %v568 = vpack.c.b16 %v489, %v488
    %v569 = vpack.c.b16 %v491, %v490
    %v570 = vpack.c.b16 %v493, %v492
    %v571 = vpack.c.b16 %v495, %v494
    %v572 = vpack.c.b16 %v497, %v496
    %v573 = vpack.c.b16 %v499, %v498
    %v574 = vpack.c.b16 %v501, %v500
    %v575 = vpack.c.b16 %v503, %v502
    %v576 = vpack.c.b16 %v505, %v504
    %v577 = vpack.c.b16 %v507, %v506
    %v578 = vpack.c.b16 %v509, %v508
    %v579 = vpack.c.b16 %v511, %v510
    %v580 = vpack.c.b16 %v513, %v512
    %v581 = vpack.c.b16 %v515, %v514
    %v582 = vpack.c.b16 %v517, %v516
    %v583 = vpack.c.b16 %v519, %v518
    %648 = vmatprep.subr.bf16.mxu0 0
    %649 = vmatpush1.bf16.msra.mxu0 %v527
    %650 = vmatprep.subr.bf16.mxu0 0
    %651 = vmatpush1.bf16.msra.mxu0 %v526
    %652 = vmatprep.subr.bf16.mxu0 0
    %653 = vmatpush1.bf16.msra.mxu0 %v525
    %654 = vmatprep.subr.bf16.mxu0 0
    %655 = vmatpush1.bf16.msra.mxu0 %v524
    %656 = vmatprep.subr.bf16.mxu0 0
    %657 = vmatpush1.bf16.msra.mxu0 %v523
    %658 = vmatprep.subr.bf16.mxu0 0
    %659 = vmatpush1.bf16.msra.mxu0 %v522
    %660 = vmatprep.subr.bf16.mxu0 0
    %661 = vmatpush1.bf16.msra.mxu0 %v521
    %662 = vmatprep.subr.bf16.mxu0 0
    %663 = vmatpush1.bf16.msra.mxu0 %v520
    %664 = vmatprep.subr.bf16.mxu0 0
    %665 = vmatpush2.bf16.msra.mxu0 %v535
    %666 = vmatprep.subr.bf16.mxu0 0
    %667 = vmatpush2.bf16.msra.mxu0 %v534
    %668 = vmatprep.subr.bf16.mxu0 0
    %669 = vmatpush2.bf16.msra.mxu0 %v533
    %670 = vmatprep.subr.bf16.mxu0 0
    %671 = vmatpush2.bf16.msra.mxu0 %v532
    %672 = vmatprep.subr.bf16.mxu0 0
    %673 = vmatpush2.bf16.msra.mxu0 %v531
    %674 = vmatprep.subr.bf16.mxu0 0
    %675 = vmatpush2.bf16.msra.mxu0 %v530
    %676 = vmatprep.subr.bf16.mxu0 0
    %677 = vmatpush2.bf16.msra.mxu0 %v529
    %678 = vmatprep.subr.bf16.mxu0 0
    %679 = vmatpush2.bf16.msra.mxu0 %v528
    %680 = vmatprep.mubr.bf16.mxu0 %v244
    %681 = vmatmul.mubr.bf16.gmra.mxu0 %v230
    %v682 = vpop.f32.mrf.mxu0
    %v683 = vadd.f32 %v204, %v682
    %v684 = vpop.f32.mrf.mxu0
    %v685 = vpop.f32.mrf.mxu0
    %v686 = vpop.f32.mrf.mxu0
    %687 = vdwg.mxu0
    %688 = vmatprep.subr.bf16.mxu0 0
    %689 = vmatpush1.bf16.msra.mxu0 %v543
    %690 = vmatprep.subr.bf16.mxu0 0
    %691 = vmatpush1.bf16.msra.mxu0 %v542
    %692 = vmatprep.subr.bf16.mxu0 0
    %693 = vmatpush1.bf16.msra.mxu0 %v541
    %694 = vmatprep.subr.bf16.mxu0 0
    %695 = vmatpush1.bf16.msra.mxu0 %v540
    %696 = vmatprep.subr.bf16.mxu0 0
    %697 = vmatpush1.bf16.msra.mxu0 %v539
    %698 = vmatprep.subr.bf16.mxu0 0
    %699 = vmatpush1.bf16.msra.mxu0 %v538
    %700 = vmatprep.subr.bf16.mxu0 0
    %701 = vmatpush1.bf16.msra.mxu0 %v537
    %702 = vmatprep.subr.bf16.mxu0 0
    %703 = vmatpush1.bf16.msra.mxu0 %v536
    %704 = vmatprep.subr.bf16.mxu0 0
    %705 = vmatpush2.bf16.msra.mxu0 %v551
    %706 = vmatprep.subr.bf16.mxu0 0
    %707 = vmatpush2.bf16.msra.mxu0 %v550
    %708 = vmatprep.subr.bf16.mxu0 0
    %709 = vmatpush2.bf16.msra.mxu0 %v549
    %710 = vmatprep.subr.bf16.mxu0 0
    %711 = vmatpush2.bf16.msra.mxu0 %v548
    %712 = vmatprep.subr.bf16.mxu0 0
    %713 = vmatpush2.bf16.msra.mxu0 %v547
    %714 = vmatprep.subr.bf16.mxu0 0
    %715 = vmatpush2.bf16.msra.mxu0 %v546
    %716 = vmatprep.subr.bf16.mxu0 0
    %717 = vmatpush2.bf16.msra.mxu0 %v545
    %718 = vmatprep.subr.bf16.mxu0 0
    %719 = vmatpush2.bf16.msra.mxu0 %v544
    %720 = vmatprep.mubr.bf16.mxu0 %v254
    %721 = vmatmul.mubr.bf16.gmra.mxu0 %v252
    %v722 = vpop.f32.mrf.mxu0
    %v723 = vadd.f32 %v683, %v722
    %v724 = vpop.f32.mrf.mxu0
    %v725 = vpop.f32.mrf.mxu0
    %v726 = vpop.f32.mrf.mxu0
    %727 = vdwg.mxu0
    %728 = vmatprep.subr.bf16.mxu0 0
    %729 = vmatpush1.bf16.msra.mxu0 %v559
    %730 = vmatprep.subr.bf16.mxu0 0
    %731 = vmatpush1.bf16.msra.mxu0 %v558
    %732 = vmatprep.subr.bf16.mxu0 0
    %733 = vmatpush1.bf16.msra.mxu0 %v557
    %734 = vmatprep.subr.bf16.mxu0 0
    %735 = vmatpush1.bf16.msra.mxu0 %v556
    %736 = vmatprep.subr.bf16.mxu0 0
    %737 = vmatpush1.bf16.msra.mxu0 %v555
    %738 = vmatprep.subr.bf16.mxu0 0
    %739 = vmatpush1.bf16.msra.mxu0 %v554
    %740 = vmatprep.subr.bf16.mxu0 0
    %741 = vmatpush1.bf16.msra.mxu0 %v553
    %742 = vmatprep.subr.bf16.mxu0 0
    %743 = vmatpush1.bf16.msra.mxu0 %v552
    %744 = vmatprep.subr.bf16.mxu0 0
    %745 = vmatpush2.bf16.msra.mxu0 %v567
    %746 = vmatprep.subr.bf16.mxu0 0
    %747 = vmatpush2.bf16.msra.mxu0 %v566
    %748 = vmatprep.subr.bf16.mxu0 0
    %749 = vmatpush2.bf16.msra.mxu0 %v565
    %750 = vmatprep.subr.bf16.mxu0 0
    %751 = vmatpush2.bf16.msra.mxu0 %v564
    %752 = vmatprep.subr.bf16.mxu0 0
    %753 = vmatpush2.bf16.msra.mxu0 %v563
    %754 = vmatprep.subr.bf16.mxu0 0
    %755 = vmatpush2.bf16.msra.mxu0 %v562
    %756 = vmatprep.subr.bf16.mxu0 0
    %757 = vmatpush2.bf16.msra.mxu0 %v561
    %758 = vmatprep.subr.bf16.mxu0 0
    %759 = vmatpush2.bf16.msra.mxu0 %v560
    %760 = vmatprep.mubr.bf16.mxu0 %v251
    %761 = vmatmul.mubr.bf16.gmra.mxu0 %v237
    %v762 = vpop.f32.mrf.mxu0
    %v763 = vadd.f32 %v723, %v762
    %v764 = vpop.f32.mrf.mxu0
    %v765 = vpop.f32.mrf.mxu0
    %v766 = vpop.f32.mrf.mxu0
    %767 = vdwg.mxu0
    %768 = vmatprep.subr.bf16.mxu0 0
    %769 = vmatpush1.bf16.msra.mxu0 %v575
    %770 = vmatprep.subr.bf16.mxu0 0
    %771 = vmatpush1.bf16.msra.mxu0 %v574
    %772 = vmatprep.subr.bf16.mxu0 0
    %773 = vmatpush1.bf16.msra.mxu0 %v573
    %774 = vmatprep.subr.bf16.mxu0 0
    %775 = vmatpush1.bf16.msra.mxu0 %v572
    %776 = vmatprep.subr.bf16.mxu0 0
    %777 = vmatpush1.bf16.msra.mxu0 %v571
    %778 = vmatprep.subr.bf16.mxu0 0
    %779 = vmatpush1.bf16.msra.mxu0 %v570
    %780 = vmatprep.subr.bf16.mxu0 0
    %781 = vmatpush1.bf16.msra.mxu0 %v569
    %782 = vmatprep.subr.bf16.mxu0 0
    %783 = vmatpush1.bf16.msra.mxu0 %v568
    %784 = vmatprep.subr.bf16.mxu0 0
    %785 = vmatpush2.bf16.msra.mxu0 %v583
    %786 = vmatprep.subr.bf16.mxu0 0
    %787 = vmatpush2.bf16.msra.mxu0 %v582
    %788 = vmatprep.subr.bf16.mxu0 0
    %789 = vmatpush2.bf16.msra.mxu0 %v581
    %790 = vmatprep.subr.bf16.mxu0 0
    %791 = vmatpush2.bf16.msra.mxu0 %v580
    %792 = vmatprep.subr.bf16.mxu0 0
    %793 = vmatpush2.bf16.msra.mxu0 %v579
    %794 = vmatprep.subr.bf16.mxu0 0
    %795 = vmatpush2.bf16.msra.mxu0 %v578
    %796 = vmatprep.subr.bf16.mxu0 0
    %797 = vmatpush2.bf16.msra.mxu0 %v577
    %798 = vmatprep.subr.bf16.mxu0 0
    %799 = vmatpush2.bf16.msra.mxu0 %v576
    %800 = vmatprep.mubr.bf16.mxu0 %v255
    %801 = vmatmul.mubr.bf16.gmra.mxu0 %v253
    %v802 = vpop.f32.mrf.mxu0
    %v803 = vadd.f32 %v763, %v802
    %v804 = vpop.f32.mrf.mxu0
    %v805 = vpop.f32.mrf.mxu0
    %v806 = vpop.f32.mrf.mxu0
    %807 = vdwg.mxu0
    %v808 = vmax.f32 %v803, 0.0
    %v809 = vld [vmem:[%s4] sm:$0xf]
    %v810 = vld [vmem:[%s4 + $0x4] sm:$0xf]
    %v811 = vld [vmem:[%s4 + $0x8] sm:$0xf]
    %v812 = vld [vmem:[%s4 + $0xc] sm:$0xf]
    %v813 = vld [vmem:[%s4 + $0x10] sm:$0xf]
    %v814 = vld [vmem:[%s4 + $0x14] sm:$0xf]
    %v815 = vld [vmem:[%s4 + $0x18] sm:$0xf]
    %v816 = vld [vmem:[%s4 + $0x1c] sm:$0xf]
    %v817 = vpack.c.bf16 %v808, %v808
    %v818 = vld [vmem:[%s5] sm:$0x1]
    %v820 = vlaneseq
    %v821 = vshrl.u32 %v820, 7
    %v822 = vsub.s32 0, %v821
    %v823 = vrot.slane %v818, %v822
    %v833 = vunpack.c.l.b16 %v809
    %v834 = vunpack.c.l.b16 %v810
    %v835 = vunpack.c.l.b16 %v811
    %v836 = vunpack.c.l.b16 %v812
    %v837 = vunpack.c.l.b16 %v813
    %v838 = vunpack.c.l.b16 %v814
    %v839 = vunpack.c.l.b16 %v815
    %v840 = vunpack.c.l.b16 %v816
    %v841 = vpack.c.b16 %v834, %v833
    %v842 = vpack.c.b16 %v836, %v835
    %v843 = vpack.c.b16 %v838, %v837
    %v844 = vpack.c.b16 %v840, %v839
    %vm849 = vcmask 523264
    %v851 = vsel %vm849, %v817, 0
    %853 = vmatprep.subr.bf16.mxu0 0
    %854 = vmatpush1.bf16.msra.mxu0 0
    %855 = vmatprep.subr.bf16.mxu0 0
    %856 = vmatpush1.bf16.msra.mxu0 0
    %857 = vmatprep.subr.bf16.mxu0 0
    %858 = vmatpush1.bf16.msra.mxu0 0
    %859 = vmatprep.subr.bf16.mxu0 0
    %860 = vmatpush1.bf16.msra.mxu0 0
    %861 = vmatprep.subr.bf16.mxu0 0
    %862 = vmatpush1.bf16.msra.mxu0 %v844
    %863 = vmatprep.subr.bf16.mxu0 0
    %864 = vmatpush1.bf16.msra.mxu0 %v843
    %865 = vmatprep.subr.bf16.mxu0 0
    %866 = vmatpush1.bf16.msra.mxu0 %v842
    %867 = vmatprep.subr.bf16.mxu0 0
    %868 = vmatpush1.bf16.msra.mxu0 %v841
    %869 = vmatprep.subr.bf16.mxu0 0
    %870 = vmatpush2.bf16.msra.mxu0 0
    %871 = vmatprep.subr.bf16.mxu0 0
    %872 = vmatpush2.bf16.msra.mxu0 0
    %873 = vmatprep.subr.bf16.mxu0 0
    %874 = vmatpush2.bf16.msra.mxu0 0
    %875 = vmatprep.subr.bf16.mxu0 0
    %876 = vmatpush2.bf16.msra.mxu0 0
    %877 = vmatprep.subr.bf16.mxu0 0
    %878 = vmatpush2.bf16.msra.mxu0 0
    %879 = vmatprep.subr.bf16.mxu0 0
    %880 = vmatpush2.bf16.msra.mxu0 0
    %881 = vmatprep.subr.bf16.mxu0 0
    %882 = vmatpush2.bf16.msra.mxu0 0
    %883 = vmatprep.subr.bf16.mxu0 0
    %884 = vmatpush2.bf16.msra.mxu0 0
    %885 = vmatprep.mubr.bf16.mxu0 0
    %886 = vmatmul.mubr.bf16.gmra.mxu0 %v851
    %v887 = vpop.f32.mrf.mxu0
    %v888 = vadd.f32 %v823, %v887
    %v889 = vpop.f32.mrf.mxu0
    %v890 = vpop.f32.mrf.mxu0
    %v891 = vpop.f32.mrf.mxu0
    %892 = vdwg.mxu0
    %v893 = vmax.f32 %v888, 0.0
    %v894 = vld [vmem:[%s6] sm:$0xf]
    %v895 = vld [vmem:[%s6 + $0x4] sm:$0xf]
    %v896 = vld [vmem:[%s6 + $0x8] sm:$0xf]
    %v897 = vld [vmem:[%s6 + $0xc] sm:$0xf]
    %v898 = vpack.c.bf16 %v893, %v893
    %v899 = vld [vmem:[%s7] sm:$0x1]
    %v901 = vlaneseq
    %v902 = vshrl.u32 %v901, 7
    %v903 = vsub.s32 0, %v902
    %v904 = vrot.slane %v899, %v903
    %v910 = vunpack.c.l.b16 %v894
    %v911 = vunpack.c.l.b16 %v895
    %v912 = vunpack.c.l.b16 %v896
    %v913 = vunpack.c.l.b16 %v897
    %v914 = vpack.c.b16 %v911, %v910
    %v915 = vpack.c.b16 %v913, %v912
    %vm918 = vcmask 261120
    %v920 = vsel %vm918, %v898, 0
    %922 = vmatprep.subr.bf16.mxu0 0
    %923 = vmatpush1.bf16.msra.mxu0 0
    %924 = vmatprep.subr.bf16.mxu0 0
    %925 = vmatpush1.bf16.msra.mxu0 0
    %926 = vmatprep.subr.bf16.mxu0 0
    %927 = vmatpush1.bf16.msra.mxu0 0
    %928 = vmatprep.subr.bf16.mxu0 0
    %929 = vmatpush1.bf16.msra.mxu0 0
    %930 = vmatprep.subr.bf16.mxu0 0
    %931 = vmatpush1.bf16.msra.mxu0 0
    %932 = vmatprep.subr.bf16.mxu0 0
    %933 = vmatpush1.bf16.msra.mxu0 0
    %934 = vmatprep.subr.bf16.mxu0 0
    %935 = vmatpush1.bf16.msra.mxu0 %v915
    %936 = vmatprep.subr.bf16.mxu0 0
    %937 = vmatpush1.bf16.msra.mxu0 %v914
    %938 = vmatprep.subr.bf16.mxu0 0
    %939 = vmatpush2.bf16.msra.mxu0 0
    %940 = vmatprep.subr.bf16.mxu0 0
    %941 = vmatpush2.bf16.msra.mxu0 0
    %942 = vmatprep.subr.bf16.mxu0 0
    %943 = vmatpush2.bf16.msra.mxu0 0
    %944 = vmatprep.subr.bf16.mxu0 0
    %945 = vmatpush2.bf16.msra.mxu0 0
    %946 = vmatprep.subr.bf16.mxu0 0
    %947 = vmatpush2.bf16.msra.mxu0 0
    %948 = vmatprep.subr.bf16.mxu0 0
    %949 = vmatpush2.bf16.msra.mxu0 0
    %950 = vmatprep.subr.bf16.mxu0 0
    %951 = vmatpush2.bf16.msra.mxu0 0
    %952 = vmatprep.subr.bf16.mxu0 0
    %953 = vmatpush2.bf16.msra.mxu0 0
    %954 = vmatprep.mubr.bf16.mxu0 0
    %955 = vmatmul.mubr.bf16.gmra.mxu0 %v920
    %v956 = vpop.f32.mrf.mxu0
    %v957 = vadd.f32 %v904, %v956
    %v958 = vpop.f32.mrf.mxu0
    %v959 = vpop.f32.mrf.mxu0
    %v960 = vpop.f32.mrf.mxu0
    %961 = vdwg.mxu0
    %vm962 = vcmp.gt.f32.partialorder %v957, 20.0
    %v963 = vmin.f32 %v957, 20.0
    %v964 = vmul.f32 %v963, 1.442695
    %v965 = vpow.pop %v964
    %v966 = vadd.f32 %v965, 1.0
    %v967 = vlog2.pop %v966
    %v968 = vmul.f32 %v967, 0.6931472
    %v969 = vmul.f32 -0.5, %v965
    %v970 = vadd.f32 %v969, 1.0
    %v971 = vmul.f32 %v970, %v965
    %v972 = vand.u32 2147483647, %v965
    %vm973 = vcmp.lt.f32.partialorder %v972, 0.0004427343
    %v974 = vsel %vm973, %v971, %v968
    %v975 = vsel %vm962, %v957, %v974
    %v976 = vrsqrt.pop %v975
    %v977 = vmul.f32 %v975, %v976
    %vm978 = vcmp.eq.f32.partialorder %v975, inf
    %v979 = vsel %vm978, %v975, %v977
    %vm980 = vcmp.eq.f32.partialorder %v975, 0.0
    %v981 = vand.u32 %v975, 2147483648
    %v982 = vsel %vm980, %v981, %v979
    %v983 = vld [vmem:[%s1] sm:$0x3]
    %985 = vrot.lane.b32.xlu0 %v983, 8
    %v986 = vpop.permute.xlu0 %985
    %v988 = vmul.f32 %v982, %v986
    %990 = vrot.lane.b32.xlu0 %v988, 120
    %v991 = vpop.permute.xlu0 %990
    %v993 = vadd.f32 %v957, %v991
    %v994 = vld [vmem:[%s8] sm:$0xf]
    %v995 = vpack.c.bf16 %v993, %v993
    %v996 = vld [vmem:[%s9] sm:$0x1]
    %v998 = vlaneseq
    %v999 = vshrl.u32 %v998, 7
    %v1000 = vsub.s32 0, %v999
    %v1001 = vrot.slane %v996, %v1000
    %vm1003 = vcmask 64512
    %v1005 = vsel %vm1003, %v995, 0
    %vm1007 = vcmask 1043456
    %v1009 = vsel %vm1007, %v994, 0
    %1011 = vmatprep.subr.bf16.mxu0 0
    %1012 = vmatpush1.bf16.msra.mxu0 0
    %1013 = vmatprep.subr.bf16.mxu0 0
    %1014 = vmatpush1.bf16.msra.mxu0 0
    %1015 = vmatprep.subr.bf16.mxu0 0
    %1016 = vmatpush1.bf16.msra.mxu0 0
    %1017 = vmatprep.subr.bf16.mxu0 0
    %1018 = vmatpush1.bf16.msra.mxu0 0
    %1019 = vmatprep.subr.bf16.mxu0 0
    %1020 = vmatpush1.bf16.msra.mxu0 0
    %1021 = vmatprep.subr.bf16.mxu0 0
    %1022 = vmatpush1.bf16.msra.mxu0 0
    %1023 = vmatprep.subr.bf16.mxu0 0
    %1024 = vmatpush1.bf16.msra.mxu0 0
    %1025 = vmatprep.subr.bf16.mxu0 0
    %1026 = vmatpush1.bf16.msra.mxu0 %v1009
    %1027 = vmatprep.subr.bf16.mxu0 0
    %1028 = vmatpush2.bf16.msra.mxu0 0
    %1029 = vmatprep.subr.bf16.mxu0 0
    %1030 = vmatpush2.bf16.msra.mxu0 0
    %1031 = vmatprep.subr.bf16.mxu0 0
    %1032 = vmatpush2.bf16.msra.mxu0 0
    %1033 = vmatprep.subr.bf16.mxu0 0
    %1034 = vmatpush2.bf16.msra.mxu0 0
    %1035 = vmatprep.subr.bf16.mxu0 0
    %1036 = vmatpush2.bf16.msra.mxu0 0
    %1037 = vmatprep.subr.bf16.mxu0 0
    %1038 = vmatpush2.bf16.msra.mxu0 0
    %1039 = vmatprep.subr.bf16.mxu0 0
    %1040 = vmatpush2.bf16.msra.mxu0 0
    %1041 = vmatprep.subr.bf16.mxu0 0
    %1042 = vmatpush2.bf16.msra.mxu0 0
    %1043 = vmatprep.mubr.bf16.mxu0 0
    %1044 = vmatmul.mubr.bf16.gmra.mxu0 %v1005
    %v1045 = vpop.f32.mrf.mxu0
    %v1046 = vadd.f32 %v1001, %v1045
    %v1047 = vpop.f32.mrf.mxu0
    %v1048 = vpop.f32.mrf.mxu0
    %v1049 = vpop.f32.mrf.mxu0
    %1050 = vdwg.mxu0
    %vm1051 = vcmp.gt.f32.partialorder %v1046, 0.0
    %v1052 = vmin.f32 %v1046, 0.0
    %v1053 = vmul.f32 %v1052, 1.442695
    %v1054 = vpow.pop %v1053
    %v1055 = vsub.f32 %v1054, 1.0
    %v1056 = vsel %vm1051, %v1046, %v1055
    %1058 = vrot.lane.b32.xlu0 %v957, 112
    %v1059 = vpop.permute.xlu0 %1058
    %v1061 = vadd.f32 %v1056, %v1059
    %v1062 = vld [vmem:[%s10] sm:$0xf]
    %v1063 = vpack.c.bf16 %v1061, %v1061
    %v1064 = vld [vmem:[%s11] sm:$0x1]
    %v1066 = vlaneseq
    %v1067 = vshrl.u32 %v1066, 7
    %v1068 = vsub.s32 0, %v1067
    %v1069 = vrot.slane %v1064, %v1068
    %v1072 = vsel %vm1003, %v1063, 0
    %v1075 = vsel %vm1007, %v1062, 0
    %1077 = vmatprep.subr.bf16.mxu0 0
    %1078 = vmatpush1.bf16.msra.mxu0 0
    %1079 = vmatprep.subr.bf16.mxu0 0
    %1080 = vmatpush1.bf16.msra.mxu0 0
    %1081 = vmatprep.subr.bf16.mxu0 0
    %1082 = vmatpush1.bf16.msra.mxu0 0
    %1083 = vmatprep.subr.bf16.mxu0 0
    %1084 = vmatpush1.bf16.msra.mxu0 0
    %1085 = vmatprep.subr.bf16.mxu0 0
    %1086 = vmatpush1.bf16.msra.mxu0 0
    %1087 = vmatprep.subr.bf16.mxu0 0
    %1088 = vmatpush1.bf16.msra.mxu0 0
    %1089 = vmatprep.subr.bf16.mxu0 0
    %1090 = vmatpush1.bf16.msra.mxu0 0
    %1091 = vmatprep.subr.bf16.mxu0 0
    %1092 = vmatpush1.bf16.msra.mxu0 %v1075
    %1093 = vmatprep.subr.bf16.mxu0 0
    %1094 = vmatpush2.bf16.msra.mxu0 0
    %1095 = vmatprep.subr.bf16.mxu0 0
    %1096 = vmatpush2.bf16.msra.mxu0 0
    %1097 = vmatprep.subr.bf16.mxu0 0
    %1098 = vmatpush2.bf16.msra.mxu0 0
    %1099 = vmatprep.subr.bf16.mxu0 0
    %1100 = vmatpush2.bf16.msra.mxu0 0
    %1101 = vmatprep.subr.bf16.mxu0 0
    %1102 = vmatpush2.bf16.msra.mxu0 0
    %1103 = vmatprep.subr.bf16.mxu0 0
    %1104 = vmatpush2.bf16.msra.mxu0 0
    %1105 = vmatprep.subr.bf16.mxu0 0
    %1106 = vmatpush2.bf16.msra.mxu0 0
    %1107 = vmatprep.subr.bf16.mxu0 0
    %1108 = vmatpush2.bf16.msra.mxu0 0
    %1109 = vmatprep.mubr.bf16.mxu0 0
    %1110 = vmatmul.mubr.bf16.gmra.mxu0 %v1072
    %v1111 = vpop.f32.mrf.mxu0
    %v1112 = vadd.f32 %v1069, %v1111
    %v1113 = vpop.f32.mrf.mxu0
    %v1114 = vpop.f32.mrf.mxu0
    %v1115 = vpop.f32.mrf.mxu0
    %1116 = vdwg.mxu0
    %vm1117 = vcmp.gt.f32.partialorder %v1112, 0.0
    %v1118 = vmin.f32 %v1112, 0.0
    %v1119 = vmul.f32 %v1118, 1.442695
    %v1120 = vpow.pop %v1119
    %v1121 = vsub.f32 %v1120, 1.0
    %v1122 = vsel %vm1117, %v1112, %v1121
    %v1123 = vld [vmem:[%s12] sm:$0xf]
    %v1124 = vpack.c.bf16 %v1122, %v1122
    %v1125 = vld [vmem:[%s13] sm:$0x1]
    %v1127 = vlaneseq
    %v1128 = vshrl.u32 %v1127, 7
    %v1129 = vsub.s32 0, %v1128
    %v1130 = vrot.slane %v1125, %v1129
    %v1133 = vsel %vm1003, %v1124, 0
    %v1136 = vsel %vm1007, %v1123, 0
    %1138 = vmatprep.subr.bf16.mxu0 0
    %1139 = vmatpush1.bf16.msra.mxu0 0
    %1140 = vmatprep.subr.bf16.mxu0 0
    %1141 = vmatpush1.bf16.msra.mxu0 0
    %1142 = vmatprep.subr.bf16.mxu0 0
    %1143 = vmatpush1.bf16.msra.mxu0 0
    %1144 = vmatprep.subr.bf16.mxu0 0
    %1145 = vmatpush1.bf16.msra.mxu0 0
    %1146 = vmatprep.subr.bf16.mxu0 0
    %1147 = vmatpush1.bf16.msra.mxu0 0
    %1148 = vmatprep.subr.bf16.mxu0 0
    %1149 = vmatpush1.bf16.msra.mxu0 0
    %1150 = vmatprep.subr.bf16.mxu0 0
    %1151 = vmatpush1.bf16.msra.mxu0 0
    %1152 = vmatprep.subr.bf16.mxu0 0
    %1153 = vmatpush1.bf16.msra.mxu0 %v1136
    %1154 = vmatprep.subr.bf16.mxu0 0
    %1155 = vmatpush2.bf16.msra.mxu0 0
    %1156 = vmatprep.subr.bf16.mxu0 0
    %1157 = vmatpush2.bf16.msra.mxu0 0
    %1158 = vmatprep.subr.bf16.mxu0 0
    %1159 = vmatpush2.bf16.msra.mxu0 0
    %1160 = vmatprep.subr.bf16.mxu0 0
    %1161 = vmatpush2.bf16.msra.mxu0 0
    %1162 = vmatprep.subr.bf16.mxu0 0
    %1163 = vmatpush2.bf16.msra.mxu0 0
    %1164 = vmatprep.subr.bf16.mxu0 0
    %1165 = vmatpush2.bf16.msra.mxu0 0
    %1166 = vmatprep.subr.bf16.mxu0 0
    %1167 = vmatpush2.bf16.msra.mxu0 0
    %1168 = vmatprep.subr.bf16.mxu0 0
    %1169 = vmatpush2.bf16.msra.mxu0 0
    %1170 = vmatprep.mubr.bf16.mxu0 0
    %1171 = vmatmul.mubr.bf16.gmra.mxu0 %v1133
    %v1172 = vpop.f32.mrf.mxu0
    %v1173 = vadd.f32 %v1130, %v1172
    %v1174 = vpop.f32.mrf.mxu0
    %v1175 = vpop.f32.mrf.mxu0
    %v1176 = vpop.f32.mrf.mxu0
    %1177 = vdwg.mxu0
    %v1178 = vsub.f32 0.0, %v1173
    %v1179 = vmul.f32 %v1178, 1.442695
    %v1180 = vpow.pop %v1179
    %v1181 = vadd.f32 %v1180, 1.0
    %v1182 = vrcp.pop %v1181
    %v1183 = vmul.f32 1.0, %v1182
    %1185 = vrot.lane.b32.xlu0 %v993, 8
    %v1186 = vpop.permute.xlu0 %1185
    %v1188 = vmul.f32 %v1183, %v1186
    %v1189 = vsub.f32 1.0, %v1183
    %1191 = vrot.lane.b32.xlu0 %v1173, 8
    %v1192 = vpop.permute.xlu0 %1191
    %v1194 = vmul.f32 %v1189, %v1192
    %v1195 = vadd.f32 %v1188, %v1194
    %vm1196 = vcmp.gt.f32.partialorder %v1178, 20.0
    %v1197 = vmin.f32 %v1178, 20.0
    %v1198 = vmul.f32 %v1197, 1.442695
    %v1199 = vpow.pop %v1198
    %v1200 = vadd.f32 %v1199, 1.0
    %v1201 = vlog2.pop %v1200
    %v1202 = vmul.f32 %v1201, 0.6931472
    %v1203 = vmul.f32 -0.5, %v1199
    %v1204 = vadd.f32 %v1203, 1.0
    %v1205 = vmul.f32 %v1204, %v1199
    %v1206 = vand.u32 2147483647, %v1199
    %vm1207 = vcmp.lt.f32.partialorder %v1206, 0.0004427343
    %v1208 = vsel %vm1207, %v1205, %v1202
    %v1209 = vsel %vm1196, %v1178, %v1208
    %1211 = vrot.lane.b32.xlu0 %v1209, 120
    %v1212 = vpop.permute.xlu0 %1211
    %vm1214 = vcmask 58368
    %v1215 = vsel %vm1214, %v1212, 0.0
    %1216 = vadd.xlane.f32.xlu0 %v1215
    %v1217 = vpop.xlane.xlu0 %1216
    %v1218 = vsub.f32 0.0, %v1217
    %s1219 = scalar_lea.vmem %s8, 4
    %v1220 = vld [vmem:[%s1219] sm:$0xf]
    %v1221 = vpack.c.bf16 %v1195, %v1195
    %s1222 = scalar_lea.vmem %s9, 1
    %v1223 = vld [vmem:[%s1222] sm:$0x1]
    %v1225 = vlaneseq
    %v1226 = vshrl.u32 %v1225, 7
    %v1227 = vsub.s32 0, %v1226
    %v1228 = vrot.slane %v1223, %v1227
    %1231 = vrot.lane.b32.xlu0 %v1221, 120
    %v1232 = vpop.permute.xlu0 %1231
    %v1234 = vsel %vm1003, %v1232, 0
    %v1237 = vsel %vm1007, %v1220, 0
    %1239 = vmatprep.subr.bf16.mxu0 0
    %1240 = vmatpush1.bf16.msra.mxu0 0
    %1241 = vmatprep.subr.bf16.mxu0 0
    %1242 = vmatpush1.bf16.msra.mxu0 0
    %1243 = vmatprep.subr.bf16.mxu0 0
    %1244 = vmatpush1.bf16.msra.mxu0 0
    %1245 = vmatprep.subr.bf16.mxu0 0
    %1246 = vmatpush1.bf16.msra.mxu0 0
    %1247 = vmatprep.subr.bf16.mxu0 0
    %1248 = vmatpush1.bf16.msra.mxu0 0
    %1249 = vmatprep.subr.bf16.mxu0 0
    %1250 = vmatpush1.bf16.msra.mxu0 0
    %1251 = vmatprep.subr.bf16.mxu0 0
    %1252 = vmatpush1.bf16.msra.mxu0 0
    %1253 = vmatprep.subr.bf16.mxu0 0
    %1254 = vmatpush1.bf16.msra.mxu0 %v1237
    %1255 = vmatprep.subr.bf16.mxu0 0
    %1256 = vmatpush2.bf16.msra.mxu0 0
    %1257 = vmatprep.subr.bf16.mxu0 0
    %1258 = vmatpush2.bf16.msra.mxu0 0
    %1259 = vmatprep.subr.bf16.mxu0 0
    %1260 = vmatpush2.bf16.msra.mxu0 0
    %1261 = vmatprep.subr.bf16.mxu0 0
    %1262 = vmatpush2.bf16.msra.mxu0 0
    %1263 = vmatprep.subr.bf16.mxu0 0
    %1264 = vmatpush2.bf16.msra.mxu0 0
    %1265 = vmatprep.subr.bf16.mxu0 0
    %1266 = vmatpush2.bf16.msra.mxu0 0
    %1267 = vmatprep.subr.bf16.mxu0 0
    %1268 = vmatpush2.bf16.msra.mxu0 0
    %1269 = vmatprep.subr.bf16.mxu0 0
    %1270 = vmatpush2.bf16.msra.mxu0 0
    %1271 = vmatprep.mubr.bf16.mxu0 0
    %1272 = vmatmul.mubr.bf16.gmra.mxu0 %v1234
    %v1273 = vpop.f32.mrf.mxu0
    %v1274 = vadd.f32 %v1228, %v1273
    %v1275 = vpop.f32.mrf.mxu0
    %v1276 = vpop.f32.mrf.mxu0
    %v1277 = vpop.f32.mrf.mxu0
    %1278 = vdwg.mxu0
    %vm1279 = vcmp.gt.f32.partialorder %v1274, 0.0
    %v1280 = vmin.f32 %v1274, 0.0
    %v1281 = vmul.f32 %v1280, 1.442695
    %v1282 = vpow.pop %v1281
    %v1283 = vsub.f32 %v1282, 1.0
    %v1284 = vsel %vm1279, %v1274, %v1283
    %v1285 = vadd.f32 %v1284, %v1059
    %s1286 = scalar_lea.vmem %s10, 4
    %v1287 = vld [vmem:[%s1286] sm:$0xf]
    %v1288 = vpack.c.bf16 %v1285, %v1285
    %s1289 = scalar_lea.vmem %s11, 1
    %v1290 = vld [vmem:[%s1289] sm:$0x1]
    %v1292 = vlaneseq
    %v1293 = vshrl.u32 %v1292, 7
    %v1294 = vsub.s32 0, %v1293
    %v1295 = vrot.slane %v1290, %v1294
    %v1298 = vsel %vm1003, %v1288, 0
    %v1301 = vsel %vm1007, %v1287, 0
    %1303 = vmatprep.subr.bf16.mxu0 0
    %1304 = vmatpush1.bf16.msra.mxu0 0
    %1305 = vmatprep.subr.bf16.mxu0 0
    %1306 = vmatpush1.bf16.msra.mxu0 0
    %1307 = vmatprep.subr.bf16.mxu0 0
    %1308 = vmatpush1.bf16.msra.mxu0 0
    %1309 = vmatprep.subr.bf16.mxu0 0
    %1310 = vmatpush1.bf16.msra.mxu0 0
    %1311 = vmatprep.subr.bf16.mxu0 0
    %1312 = vmatpush1.bf16.msra.mxu0 0
    %1313 = vmatprep.subr.bf16.mxu0 0
    %1314 = vmatpush1.bf16.msra.mxu0 0
    %1315 = vmatprep.subr.bf16.mxu0 0
    %1316 = vmatpush1.bf16.msra.mxu0 0
    %1317 = vmatprep.subr.bf16.mxu0 0
    %1318 = vmatpush1.bf16.msra.mxu0 %v1301
    %1319 = vmatprep.subr.bf16.mxu0 0
    %1320 = vmatpush2.bf16.msra.mxu0 0
    %1321 = vmatprep.subr.bf16.mxu0 0
    %1322 = vmatpush2.bf16.msra.mxu0 0
    %1323 = vmatprep.subr.bf16.mxu0 0
    %1324 = vmatpush2.bf16.msra.mxu0 0
    %1325 = vmatprep.subr.bf16.mxu0 0
    %1326 = vmatpush2.bf16.msra.mxu0 0
    %1327 = vmatprep.subr.bf16.mxu0 0
    %1328 = vmatpush2.bf16.msra.mxu0 0
    %1329 = vmatprep.subr.bf16.mxu0 0
    %1330 = vmatpush2.bf16.msra.mxu0 0
    %1331 = vmatprep.subr.bf16.mxu0 0
    %1332 = vmatpush2.bf16.msra.mxu0 0
    %1333 = vmatprep.subr.bf16.mxu0 0
    %1334 = vmatpush2.bf16.msra.mxu0 0
    %1335 = vmatprep.mubr.bf16.mxu0 0
    %1336 = vmatmul.mubr.bf16.gmra.mxu0 %v1298
    %v1337 = vpop.f32.mrf.mxu0
    %v1338 = vadd.f32 %v1295, %v1337
    %v1339 = vpop.f32.mrf.mxu0
    %v1340 = vpop.f32.mrf.mxu0
    %v1341 = vpop.f32.mrf.mxu0
    %1342 = vdwg.mxu0
    %vm1343 = vcmp.gt.f32.partialorder %v1338, 0.0
    %v1344 = vmin.f32 %v1338, 0.0
    %v1345 = vmul.f32 %v1344, 1.442695
    %v1346 = vpow.pop %v1345
    %v1347 = vsub.f32 %v1346, 1.0
    %v1348 = vsel %vm1343, %v1338, %v1347
    %s1349 = scalar_lea.vmem %s12, 4
    %v1350 = vld [vmem:[%s1349] sm:$0xf]
    %v1351 = vpack.c.bf16 %v1348, %v1348
    %s1352 = scalar_lea.vmem %s13, 1
    %v1353 = vld [vmem:[%s1352] sm:$0x1]
    %v1355 = vlaneseq
    %v1356 = vshrl.u32 %v1355, 7
    %v1357 = vsub.s32 0, %v1356
    %v1358 = vrot.slane %v1353, %v1357
    %v1361 = vsel %vm1003, %v1351, 0
    %v1364 = vsel %vm1007, %v1350, 0
    %1366 = vmatprep.subr.bf16.mxu0 0
    %1367 = vmatpush1.bf16.msra.mxu0 0
    %1368 = vmatprep.subr.bf16.mxu0 0
    %1369 = vmatpush1.bf16.msra.mxu0 0
    %1370 = vmatprep.subr.bf16.mxu0 0
    %1371 = vmatpush1.bf16.msra.mxu0 0
    %1372 = vmatprep.subr.bf16.mxu0 0
    %1373 = vmatpush1.bf16.msra.mxu0 0
    %1374 = vmatprep.subr.bf16.mxu0 0
    %1375 = vmatpush1.bf16.msra.mxu0 0
    %1376 = vmatprep.subr.bf16.mxu0 0
    %1377 = vmatpush1.bf16.msra.mxu0 0
    %1378 = vmatprep.subr.bf16.mxu0 0
    %1379 = vmatpush1.bf16.msra.mxu0 0
    %1380 = vmatprep.subr.bf16.mxu0 0
    %1381 = vmatpush1.bf16.msra.mxu0 %v1364
    %1382 = vmatprep.subr.bf16.mxu0 0
    %1383 = vmatpush2.bf16.msra.mxu0 0
    %1384 = vmatprep.subr.bf16.mxu0 0
    %1385 = vmatpush2.bf16.msra.mxu0 0
    %1386 = vmatprep.subr.bf16.mxu0 0
    %1387 = vmatpush2.bf16.msra.mxu0 0
    %1388 = vmatprep.subr.bf16.mxu0 0
    %1389 = vmatpush2.bf16.msra.mxu0 0
    %1390 = vmatprep.subr.bf16.mxu0 0
    %1391 = vmatpush2.bf16.msra.mxu0 0
    %1392 = vmatprep.subr.bf16.mxu0 0
    %1393 = vmatpush2.bf16.msra.mxu0 0
    %1394 = vmatprep.subr.bf16.mxu0 0
    %1395 = vmatpush2.bf16.msra.mxu0 0
    %1396 = vmatprep.subr.bf16.mxu0 0
    %1397 = vmatpush2.bf16.msra.mxu0 0
    %1398 = vmatprep.mubr.bf16.mxu0 0
    %1399 = vmatmul.mubr.bf16.gmra.mxu0 %v1361
    %v1400 = vpop.f32.mrf.mxu0
    %v1401 = vadd.f32 %v1358, %v1400
    %v1402 = vpop.f32.mrf.mxu0
    %v1403 = vpop.f32.mrf.mxu0
    %v1404 = vpop.f32.mrf.mxu0
    %1405 = vdwg.mxu0
    %v1406 = vsub.f32 0.0, %v1401
    %v1407 = vmul.f32 %v1406, 1.442695
    %v1408 = vpow.pop %v1407
    %v1409 = vadd.f32 %v1408, 1.0
    %v1410 = vrcp.pop %v1409
    %v1411 = vmul.f32 1.0, %v1410
    %v1412 = vmul.f32 %v1411, %v1195
    %v1413 = vsub.f32 1.0, %v1411
    %1415 = vrot.lane.b32.xlu0 %v1401, 8
    %v1416 = vpop.permute.xlu0 %1415
    %v1418 = vmul.f32 %v1413, %v1416
    %v1419 = vadd.f32 %v1412, %v1418
    %vm1420 = vcmp.gt.f32.partialorder %v1406, 20.0
    %v1421 = vmin.f32 %v1406, 20.0
    %v1422 = vmul.f32 %v1421, 1.442695
    %v1423 = vpow.pop %v1422
    %v1424 = vadd.f32 %v1423, 1.0
    %v1425 = vlog2.pop %v1424
    %v1426 = vmul.f32 %v1425, 0.6931472
    %v1427 = vmul.f32 -0.5, %v1423
    %v1428 = vadd.f32 %v1427, 1.0
    %v1429 = vmul.f32 %v1428, %v1423
    %v1430 = vand.u32 2147483647, %v1423
    %vm1431 = vcmp.lt.f32.partialorder %v1430, 0.0004427343
    %v1432 = vsel %vm1431, %v1429, %v1426
    %v1433 = vsel %vm1420, %v1406, %v1432
    %1435 = vrot.lane.b32.xlu0 %v1433, 120
    %v1436 = vpop.permute.xlu0 %1435
    %v1438 = vsel %vm1214, %v1436, 0.0
    %1439 = vadd.xlane.f32.xlu0 %v1438
    %v1440 = vpop.xlane.xlu0 %1439
    %v1441 = vsub.f32 %v1218, %v1440
    %v1442 = vld [vmem:[%s14] sm:$0xf]
    %v1443 = vpack.c.bf16 %v1419, %v1419
    %v1444 = vld [vmem:[%s15] sm:$0x1]
    %v1446 = vlaneseq
    %v1447 = vshrl.u32 %v1446, 7
    %v1448 = vsub.s32 0, %v1447
    %v1449 = vrot.slane %v1444, %v1448
    %1452 = vrot.lane.b32.xlu0 %v1443, 120
    %v1453 = vpop.permute.xlu0 %1452
    %v1455 = vsel %vm1003, %v1453, 0
    %v1458 = vsel %vm1007, %v1442, 0
    %1460 = vmatprep.subr.bf16.mxu0 0
    %1461 = vmatpush1.bf16.msra.mxu0 0
    %1462 = vmatprep.subr.bf16.mxu0 0
    %1463 = vmatpush1.bf16.msra.mxu0 0
    %1464 = vmatprep.subr.bf16.mxu0 0
    %1465 = vmatpush1.bf16.msra.mxu0 0
    %1466 = vmatprep.subr.bf16.mxu0 0
    %1467 = vmatpush1.bf16.msra.mxu0 0
    %1468 = vmatprep.subr.bf16.mxu0 0
    %1469 = vmatpush1.bf16.msra.mxu0 0
    %1470 = vmatprep.subr.bf16.mxu0 0
    %1471 = vmatpush1.bf16.msra.mxu0 0
    %1472 = vmatprep.subr.bf16.mxu0 0
    %1473 = vmatpush1.bf16.msra.mxu0 0
    %1474 = vmatprep.subr.bf16.mxu0 0
    %1475 = vmatpush1.bf16.msra.mxu0 %v1458
    %1476 = vmatprep.subr.bf16.mxu0 0
    %1477 = vmatpush2.bf16.msra.mxu0 0
    %1478 = vmatprep.subr.bf16.mxu0 0
    %1479 = vmatpush2.bf16.msra.mxu0 0
    %1480 = vmatprep.subr.bf16.mxu0 0
    %1481 = vmatpush2.bf16.msra.mxu0 0
    %1482 = vmatprep.subr.bf16.mxu0 0
    %1483 = vmatpush2.bf16.msra.mxu0 0
    %1484 = vmatprep.subr.bf16.mxu0 0
    %1485 = vmatpush2.bf16.msra.mxu0 0
    %1486 = vmatprep.subr.bf16.mxu0 0
    %1487 = vmatpush2.bf16.msra.mxu0 0
    %1488 = vmatprep.subr.bf16.mxu0 0
    %1489 = vmatpush2.bf16.msra.mxu0 0
    %1490 = vmatprep.subr.bf16.mxu0 0
    %1491 = vmatpush2.bf16.msra.mxu0 0
    %1492 = vmatprep.mubr.bf16.mxu0 0
    %1493 = vmatmul.mubr.bf16.gmra.mxu0 %v1455
    %v1494 = vpop.f32.mrf.mxu0
    %v1495 = vadd.f32 %v1449, %v1494
    %v1496 = vpop.f32.mrf.mxu0
    %v1497 = vpop.f32.mrf.mxu0
    %v1498 = vpop.f32.mrf.mxu0
    %1499 = vdwg.mxu0
    %v1500 = vmax.f32 %v1495, 0.0
    %v1501 = vld [vmem:[%s16] sm:$0xf]
    %v1502 = vld [vmem:[%s16 + $0x4] sm:$0xf]
    %v1503 = vld [vmem:[%s16 + $0x8] sm:$0xf]
    %v1504 = vld [vmem:[%s16 + $0xc] sm:$0xf]
    %v1505 = vpack.c.bf16 %v1500, %v1500
    %v1506 = vld [vmem:[%s17] sm:$0x1]
    %v1508 = vlaneseq
    %v1509 = vshrl.u32 %v1508, 7
    %v1510 = vsub.s32 0, %v1509
    %v1511 = vrot.slane %v1506, %v1510
    %v1517 = vunpack.c.l.b16 %v1501
    %v1518 = vunpack.c.l.b16 %v1502
    %v1519 = vunpack.c.l.b16 %v1503
    %v1520 = vunpack.c.l.b16 %v1504
    %v1521 = vpack.c.b16 %v1518, %v1517
    %v1522 = vpack.c.b16 %v1520, %v1519
    %v1526 = vsel %vm918, %v1505, 0
    %1528 = vmatprep.subr.bf16.mxu0 0
    %1529 = vmatpush1.bf16.msra.mxu0 0
    %1530 = vmatprep.subr.bf16.mxu0 0
    %1531 = vmatpush1.bf16.msra.mxu0 0
    %1532 = vmatprep.subr.bf16.mxu0 0
    %1533 = vmatpush1.bf16.msra.mxu0 0
    %1534 = vmatprep.subr.bf16.mxu0 0
    %1535 = vmatpush1.bf16.msra.mxu0 0
    %1536 = vmatprep.subr.bf16.mxu0 0
    %1537 = vmatpush1.bf16.msra.mxu0 0
    %1538 = vmatprep.subr.bf16.mxu0 0
    %1539 = vmatpush1.bf16.msra.mxu0 0
    %1540 = vmatprep.subr.bf16.mxu0 0
    %1541 = vmatpush1.bf16.msra.mxu0 %v1522
    %1542 = vmatprep.subr.bf16.mxu0 0
    %1543 = vmatpush1.bf16.msra.mxu0 %v1521
    %1544 = vmatprep.subr.bf16.mxu0 0
    %1545 = vmatpush2.bf16.msra.mxu0 0
    %1546 = vmatprep.subr.bf16.mxu0 0
    %1547 = vmatpush2.bf16.msra.mxu0 0
    %1548 = vmatprep.subr.bf16.mxu0 0
    %1549 = vmatpush2.bf16.msra.mxu0 0
    %1550 = vmatprep.subr.bf16.mxu0 0
    %1551 = vmatpush2.bf16.msra.mxu0 0
    %1552 = vmatprep.subr.bf16.mxu0 0
    %1553 = vmatpush2.bf16.msra.mxu0 0
    %1554 = vmatprep.subr.bf16.mxu0 0
    %1555 = vmatpush2.bf16.msra.mxu0 0
    %1556 = vmatprep.subr.bf16.mxu0 0
    %1557 = vmatpush2.bf16.msra.mxu0 0
    %1558 = vmatprep.subr.bf16.mxu0 0
    %1559 = vmatpush2.bf16.msra.mxu0 0
    %1560 = vmatprep.mubr.bf16.mxu0 0
    %1561 = vmatmul.mubr.bf16.gmra.mxu0 %v1526
    %v1562 = vpop.f32.mrf.mxu0
    %v1563 = vadd.f32 %v1511, %v1562
    %v1564 = vpop.f32.mrf.mxu0
    %v1565 = vpop.f32.mrf.mxu0
    %v1566 = vpop.f32.mrf.mxu0
    %1567 = vdwg.mxu0
    %v1568 = vmax.f32 %v1563, 0.0
    %v1569 = vld [vmem:[%s18] sm:$0xff]
    %v1570 = vld [vmem:[%s18 + $0x8] sm:$0xff]
    %v1571 = vld [vmem:[%s18 + $0x10] sm:$0xff]
    %v1572 = vld [vmem:[%s18 + $0x18] sm:$0xff]
    %v1573 = vld [vmem:[%s18 + $0x20] sm:$0xff]
    %v1574 = vld [vmem:[%s18 + $0x28] sm:$0xff]
    %v1575 = vld [vmem:[%s18 + $0x30] sm:$0xff]
    %v1576 = vld [vmem:[%s18 + $0x38] sm:$0xff]
    %v1577 = vld [vmem:[%s18 + $0x40] sm:$0xff]
    %v1578 = vld [vmem:[%s18 + $0x48] sm:$0xff]
    %v1579 = vld [vmem:[%s18 + $0x50] sm:$0xff]
    %v1580 = vld [vmem:[%s18 + $0x58] sm:$0xff]
    %v1581 = vld [vmem:[%s18 + $0x60] sm:$0xff]
    %v1582 = vld [vmem:[%s18 + $0x68] sm:$0xff]
    %v1583 = vld [vmem:[%s18 + $0x70] sm:$0xff]
    %v1584 = vld [vmem:[%s18 + $0x78] sm:$0xff]
    %v1585 = vld [vmem:[%s18 + $0x80] sm:$0xff]
    %v1586 = vld [vmem:[%s18 + $0x88] sm:$0xff]
    %v1587 = vld [vmem:[%s18 + $0x90] sm:$0xff]
    %v1588 = vld [vmem:[%s18 + $0x98] sm:$0xff]
    %v1589 = vld [vmem:[%s18 + $0xa0] sm:$0xff]
    %v1590 = vld [vmem:[%s18 + $0xa8] sm:$0xff]
    %v1591 = vld [vmem:[%s18 + $0xb0] sm:$0xff]
    %v1592 = vld [vmem:[%s18 + $0xb8] sm:$0xff]
    %v1593 = vld [vmem:[%s18 + $0xc0] sm:$0xff]
    %v1594 = vld [vmem:[%s18 + $0xc8] sm:$0xff]
    %v1595 = vld [vmem:[%s18 + $0xd0] sm:$0xff]
    %v1596 = vld [vmem:[%s18 + $0xd8] sm:$0xff]
    %v1597 = vld [vmem:[%s18 + $0xe0] sm:$0xff]
    %v1598 = vld [vmem:[%s18 + $0xe8] sm:$0xff]
    %v1599 = vld [vmem:[%s18 + $0xf0] sm:$0xff]
    %v1600 = vld [vmem:[%s18 + $0xf8] sm:$0xff]
    %v1601 = vpack.c.bf16 %v1568, %v1568
    %v1602 = vld [vmem:[%s19] sm:$0xff]
    %v1604 = vlaneseq
    %v1605 = vshrl.u32 %v1604, 7
    %v1606 = vsub.s32 0, %v1605
    %v1607 = vrot.slane %v1602, %v1606
    %v1608 = vlaneseq
    %v1609 = vshrl.u32 %v1608, 7
    %v1610 = vsub.s32 1, %v1609
    %v1611 = vrot.slane %v1602, %v1610
    %v1612 = vlaneseq
    %v1613 = vshrl.u32 %v1612, 7
    %v1614 = vsub.s32 2, %v1613
    %v1615 = vrot.slane %v1602, %v1614
    %v1616 = vlaneseq
    %v1617 = vshrl.u32 %v1616, 7
    %v1618 = vsub.s32 3, %v1617
    %v1619 = vrot.slane %v1602, %v1618
    %v1620 = vlaneseq
    %v1621 = vshrl.u32 %v1620, 7
    %v1622 = vsub.s32 4, %v1621
    %v1623 = vrot.slane %v1602, %v1622
    %v1624 = vlaneseq
    %v1625 = vshrl.u32 %v1624, 7
    %v1626 = vsub.s32 5, %v1625
    %v1627 = vrot.slane %v1602, %v1626
    %v1628 = vlaneseq
    %v1629 = vshrl.u32 %v1628, 7
    %v1630 = vsub.s32 6, %v1629
    %v1631 = vrot.slane %v1602, %v1630
    %v1632 = vlaneseq
    %v1633 = vshrl.u32 %v1632, 7
    %v1634 = vsub.s32 7, %v1633
    %v1635 = vrot.slane %v1602, %v1634
    %v1676 = vunpack.c.l.b16 %v1569
    %v1677 = vunpack.c.h.b16 %v1569
    %v1678 = vunpack.c.l.b16 %v1570
    %v1679 = vunpack.c.h.b16 %v1570
    %v1680 = vunpack.c.l.b16 %v1571
    %v1681 = vunpack.c.h.b16 %v1571
    %v1682 = vunpack.c.l.b16 %v1572
    %v1683 = vunpack.c.h.b16 %v1572
    %v1684 = vunpack.c.l.b16 %v1573
    %v1685 = vunpack.c.h.b16 %v1573
    %v1686 = vunpack.c.l.b16 %v1574
    %v1687 = vunpack.c.h.b16 %v1574
    %v1688 = vunpack.c.l.b16 %v1575
    %v1689 = vunpack.c.h.b16 %v1575
    %v1690 = vunpack.c.l.b16 %v1576
    %v1691 = vunpack.c.h.b16 %v1576
    %v1692 = vunpack.c.l.b16 %v1577
    %v1693 = vunpack.c.h.b16 %v1577
    %v1694 = vunpack.c.l.b16 %v1578
    %v1695 = vunpack.c.h.b16 %v1578
    %v1696 = vunpack.c.l.b16 %v1579
    %v1697 = vunpack.c.h.b16 %v1579
    %v1698 = vunpack.c.l.b16 %v1580
    %v1699 = vunpack.c.h.b16 %v1580
    %v1700 = vunpack.c.l.b16 %v1581
    %v1701 = vunpack.c.h.b16 %v1581
    %v1702 = vunpack.c.l.b16 %v1582
    %v1703 = vunpack.c.h.b16 %v1582
    %v1704 = vunpack.c.l.b16 %v1583
    %v1705 = vunpack.c.h.b16 %v1583
    %v1706 = vunpack.c.l.b16 %v1584
    %v1707 = vunpack.c.h.b16 %v1584
    %v1708 = vunpack.c.l.b16 %v1585
    %v1709 = vunpack.c.h.b16 %v1585
    %v1710 = vunpack.c.l.b16 %v1586
    %v1711 = vunpack.c.h.b16 %v1586
    %v1712 = vunpack.c.l.b16 %v1587
    %v1713 = vunpack.c.h.b16 %v1587
    %v1714 = vunpack.c.l.b16 %v1588
    %v1715 = vunpack.c.h.b16 %v1588
    %v1716 = vunpack.c.l.b16 %v1589
    %v1717 = vunpack.c.h.b16 %v1589
    %v1718 = vunpack.c.l.b16 %v1590
    %v1719 = vunpack.c.h.b16 %v1590
    %v1720 = vunpack.c.l.b16 %v1591
    %v1721 = vunpack.c.h.b16 %v1591
    %v1722 = vunpack.c.l.b16 %v1592
    %v1723 = vunpack.c.h.b16 %v1592
    %v1724 = vunpack.c.l.b16 %v1593
    %v1725 = vunpack.c.h.b16 %v1593
    %v1726 = vunpack.c.l.b16 %v1594
    %v1727 = vunpack.c.h.b16 %v1594
    %v1728 = vunpack.c.l.b16 %v1595
    %v1729 = vunpack.c.h.b16 %v1595
    %v1730 = vunpack.c.l.b16 %v1596
    %v1731 = vunpack.c.h.b16 %v1596
    %v1732 = vunpack.c.l.b16 %v1597
    %v1733 = vunpack.c.h.b16 %v1597
    %v1734 = vunpack.c.l.b16 %v1598
    %v1735 = vunpack.c.h.b16 %v1598
    %v1736 = vunpack.c.l.b16 %v1599
    %v1737 = vunpack.c.h.b16 %v1599
    %v1738 = vunpack.c.l.b16 %v1600
    %v1739 = vunpack.c.h.b16 %v1600
    %v1740 = vpack.c.b16 %v1684, %v1676
    %v1741 = vpack.c.b16 %v1685, %v1677
    %v1742 = vpack.c.b16 %v1686, %v1678
    %v1743 = vpack.c.b16 %v1687, %v1679
    %v1744 = vpack.c.b16 %v1688, %v1680
    %v1745 = vpack.c.b16 %v1689, %v1681
    %v1746 = vpack.c.b16 %v1690, %v1682
    %v1747 = vpack.c.b16 %v1691, %v1683
    %v1748 = vpack.c.b16 %v1700, %v1692
    %v1749 = vpack.c.b16 %v1701, %v1693
    %v1750 = vpack.c.b16 %v1702, %v1694
    %v1751 = vpack.c.b16 %v1703, %v1695
    %v1752 = vpack.c.b16 %v1704, %v1696
    %v1753 = vpack.c.b16 %v1705, %v1697
    %v1754 = vpack.c.b16 %v1706, %v1698
    %v1755 = vpack.c.b16 %v1707, %v1699
    %v1756 = vpack.c.b16 %v1716, %v1708
    %v1757 = vpack.c.b16 %v1717, %v1709
    %v1758 = vpack.c.b16 %v1718, %v1710
    %v1759 = vpack.c.b16 %v1719, %v1711
    %v1760 = vpack.c.b16 %v1720, %v1712
    %v1761 = vpack.c.b16 %v1721, %v1713
    %v1762 = vpack.c.b16 %v1722, %v1714
    %v1763 = vpack.c.b16 %v1723, %v1715
    %v1764 = vpack.c.b16 %v1732, %v1724
    %v1765 = vpack.c.b16 %v1733, %v1725
    %v1766 = vpack.c.b16 %v1734, %v1726
    %v1767 = vpack.c.b16 %v1735, %v1727
    %v1768 = vpack.c.b16 %v1736, %v1728
    %v1769 = vpack.c.b16 %v1737, %v1729
    %v1770 = vpack.c.b16 %v1738, %v1730
    %v1771 = vpack.c.b16 %v1739, %v1731
    %v1805 = vsel %vm849, %v1601, 0
    %1807 = vmatprep.subr.bf16.mxu0 0
    %1808 = vmatpush1.bf16.msra.mxu0 0
    %1809 = vmatprep.subr.bf16.mxu0 0
    %1810 = vmatpush1.bf16.msra.mxu0 0
    %1811 = vmatprep.subr.bf16.mxu0 0
    %1812 = vmatpush1.bf16.msra.mxu0 0
    %1813 = vmatprep.subr.bf16.mxu0 0
    %1814 = vmatpush1.bf16.msra.mxu0 0
    %1815 = vmatprep.subr.bf16.mxu0 %v1765
    %1816 = vmatpush1.bf16.msra.mxu0 %v1764
    %1817 = vmatprep.subr.bf16.mxu0 %v1757
    %1818 = vmatpush1.bf16.msra.mxu0 %v1756
    %1819 = vmatprep.subr.bf16.mxu0 %v1749
    %1820 = vmatpush1.bf16.msra.mxu0 %v1748
    %1821 = vmatprep.subr.bf16.mxu0 %v1741
    %1822 = vmatpush1.bf16.msra.mxu0 %v1740
    %1823 = vmatprep.subr.bf16.mxu0 0
    %1824 = vmatpush2.bf16.msra.mxu0 0
    %1825 = vmatprep.subr.bf16.mxu0 0
    %1826 = vmatpush2.bf16.msra.mxu0 0
    %1827 = vmatprep.subr.bf16.mxu0 0
    %1828 = vmatpush2.bf16.msra.mxu0 0
    %1829 = vmatprep.subr.bf16.mxu0 0
    %1830 = vmatpush2.bf16.msra.mxu0 0
    %1831 = vmatprep.subr.bf16.mxu0 0
    %1832 = vmatpush2.bf16.msra.mxu0 0
    %1833 = vmatprep.subr.bf16.mxu0 0
    %1834 = vmatpush2.bf16.msra.mxu0 0
    %1835 = vmatprep.subr.bf16.mxu0 0
    %1836 = vmatpush2.bf16.msra.mxu0 0
    %1837 = vmatprep.subr.bf16.mxu0 0
    %1838 = vmatpush2.bf16.msra.mxu0 0
    %1839 = vmatprep.mubr.bf16.mxu0 0
    %1840 = vmatmul.mubr.bf16.gmra.mxu0 %v1805
    %v1841 = vpop.f32.mrf.mxu0
    %v1842 = vadd.f32 %v1607, %v1841
    %v1843 = vpop.f32.mrf.mxu0
    %v1844 = vadd.f32 %v1611, %v1843
    %v1845 = vpop.f32.mrf.mxu0
    %v1846 = vpop.f32.mrf.mxu0
    %1847 = vdwg.mxu0
    %1848 = vmatprep.subr.bf16.mxu0 0
    %1849 = vmatpush1.bf16.msra.mxu0 0
    %1850 = vmatprep.subr.bf16.mxu0 0
    %1851 = vmatpush1.bf16.msra.mxu0 0
    %1852 = vmatprep.subr.bf16.mxu0 0
    %1853 = vmatpush1.bf16.msra.mxu0 0
    %1854 = vmatprep.subr.bf16.mxu0 0
    %1855 = vmatpush1.bf16.msra.mxu0 0
    %1856 = vmatprep.subr.bf16.mxu0 %v1767
    %1857 = vmatpush1.bf16.msra.mxu0 %v1766
    %1858 = vmatprep.subr.bf16.mxu0 %v1759
    %1859 = vmatpush1.bf16.msra.mxu0 %v1758
    %1860 = vmatprep.subr.bf16.mxu0 %v1751
    %1861 = vmatpush1.bf16.msra.mxu0 %v1750
    %1862 = vmatprep.subr.bf16.mxu0 %v1743
    %1863 = vmatpush1.bf16.msra.mxu0 %v1742
    %1864 = vmatprep.subr.bf16.mxu0 0
    %1865 = vmatpush2.bf16.msra.mxu0 0
    %1866 = vmatprep.subr.bf16.mxu0 0
    %1867 = vmatpush2.bf16.msra.mxu0 0
    %1868 = vmatprep.subr.bf16.mxu0 0
    %1869 = vmatpush2.bf16.msra.mxu0 0
    %1870 = vmatprep.subr.bf16.mxu0 0
    %1871 = vmatpush2.bf16.msra.mxu0 0
    %1872 = vmatprep.subr.bf16.mxu0 0
    %1873 = vmatpush2.bf16.msra.mxu0 0
    %1874 = vmatprep.subr.bf16.mxu0 0
    %1875 = vmatpush2.bf16.msra.mxu0 0
    %1876 = vmatprep.subr.bf16.mxu0 0
    %1877 = vmatpush2.bf16.msra.mxu0 0
    %1878 = vmatprep.subr.bf16.mxu0 0
    %1879 = vmatpush2.bf16.msra.mxu0 0
    %1880 = vmatprep.mubr.bf16.mxu0 0
    %1881 = vmatmul.mubr.bf16.gmra.mxu0 %v1805
    %v1882 = vpop.f32.mrf.mxu0
    %v1883 = vadd.f32 %v1615, %v1882
    %v1884 = vpop.f32.mrf.mxu0
    %v1885 = vadd.f32 %v1619, %v1884
    %v1886 = vpop.f32.mrf.mxu0
    %v1887 = vpop.f32.mrf.mxu0
    %1888 = vdwg.mxu0
    %1889 = vmatprep.subr.bf16.mxu0 0
    %1890 = vmatpush1.bf16.msra.mxu0 0
    %1891 = vmatprep.subr.bf16.mxu0 0
    %1892 = vmatpush1.bf16.msra.mxu0 0
    %1893 = vmatprep.subr.bf16.mxu0 0
    %1894 = vmatpush1.bf16.msra.mxu0 0
    %1895 = vmatprep.subr.bf16.mxu0 0
    %1896 = vmatpush1.bf16.msra.mxu0 0
    %1897 = vmatprep.subr.bf16.mxu0 %v1769
    %1898 = vmatpush1.bf16.msra.mxu0 %v1768
    %1899 = vmatprep.subr.bf16.mxu0 %v1761
    %1900 = vmatpush1.bf16.msra.mxu0 %v1760
    %1901 = vmatprep.subr.bf16.mxu0 %v1753
    %1902 = vmatpush1.bf16.msra.mxu0 %v1752
    %1903 = vmatprep.subr.bf16.mxu0 %v1745
    %1904 = vmatpush1.bf16.msra.mxu0 %v1744
    %1905 = vmatprep.subr.bf16.mxu0 0
    %1906 = vmatpush2.bf16.msra.mxu0 0
    %1907 = vmatprep.subr.bf16.mxu0 0
    %1908 = vmatpush2.bf16.msra.mxu0 0
    %1909 = vmatprep.subr.bf16.mxu0 0
    %1910 = vmatpush2.bf16.msra.mxu0 0
    %1911 = vmatprep.subr.bf16.mxu0 0
    %1912 = vmatpush2.bf16.msra.mxu0 0
    %1913 = vmatprep.subr.bf16.mxu0 0
    %1914 = vmatpush2.bf16.msra.mxu0 0
    %1915 = vmatprep.subr.bf16.mxu0 0
    %1916 = vmatpush2.bf16.msra.mxu0 0
    %1917 = vmatprep.subr.bf16.mxu0 0
    %1918 = vmatpush2.bf16.msra.mxu0 0
    %1919 = vmatprep.subr.bf16.mxu0 0
    %1920 = vmatpush2.bf16.msra.mxu0 0
    %1921 = vmatprep.mubr.bf16.mxu0 0
    %1922 = vmatmul.mubr.bf16.gmra.mxu0 %v1805
    %v1923 = vpop.f32.mrf.mxu0
    %v1924 = vadd.f32 %v1623, %v1923
    %v1925 = vpop.f32.mrf.mxu0
    %v1926 = vadd.f32 %v1627, %v1925
    %v1927 = vpop.f32.mrf.mxu0
    %v1928 = vpop.f32.mrf.mxu0
    %1929 = vdwg.mxu0
    %1930 = vmatprep.subr.bf16.mxu0 0
    %1931 = vmatpush1.bf16.msra.mxu0 0
    %1932 = vmatprep.subr.bf16.mxu0 0
    %1933 = vmatpush1.bf16.msra.mxu0 0
    %1934 = vmatprep.subr.bf16.mxu0 0
    %1935 = vmatpush1.bf16.msra.mxu0 0
    %1936 = vmatprep.subr.bf16.mxu0 0
    %1937 = vmatpush1.bf16.msra.mxu0 0
    %1938 = vmatprep.subr.bf16.mxu0 %v1771
    %1939 = vmatpush1.bf16.msra.mxu0 %v1770
    %1940 = vmatprep.subr.bf16.mxu0 %v1763
    %1941 = vmatpush1.bf16.msra.mxu0 %v1762
    %1942 = vmatprep.subr.bf16.mxu0 %v1755
    %1943 = vmatpush1.bf16.msra.mxu0 %v1754
    %1944 = vmatprep.subr.bf16.mxu0 %v1747
    %1945 = vmatpush1.bf16.msra.mxu0 %v1746
    %1946 = vmatprep.subr.bf16.mxu0 0
    %1947 = vmatpush2.bf16.msra.mxu0 0
    %1948 = vmatprep.subr.bf16.mxu0 0
    %1949 = vmatpush2.bf16.msra.mxu0 0
    %1950 = vmatprep.subr.bf16.mxu0 0
    %1951 = vmatpush2.bf16.msra.mxu0 0
    %1952 = vmatprep.subr.bf16.mxu0 0
    %1953 = vmatpush2.bf16.msra.mxu0 0
    %1954 = vmatprep.subr.bf16.mxu0 0
    %1955 = vmatpush2.bf16.msra.mxu0 0
    %1956 = vmatprep.subr.bf16.mxu0 0
    %1957 = vmatpush2.bf16.msra.mxu0 0
    %1958 = vmatprep.subr.bf16.mxu0 0
    %1959 = vmatpush2.bf16.msra.mxu0 0
    %1960 = vmatprep.subr.bf16.mxu0 0
    %1961 = vmatpush2.bf16.msra.mxu0 0
    %1962 = vmatprep.mubr.bf16.mxu0 0
    %1963 = vmatmul.mubr.bf16.gmra.mxu0 %v1805
    %v1964 = vpop.f32.mrf.mxu0
    %v1965 = vadd.f32 %v1631, %v1964
    %v1966 = vpop.f32.mrf.mxu0
    %v1967 = vadd.f32 %v1635, %v1966
    %v1968 = vpop.f32.mrf.mxu0
    %v1969 = vpop.f32.mrf.mxu0
    %1970 = vdwg.mxu0
    %v1979 = vcombine.low %v1842, %v1844
    %v1980 = vcombine.low %v1883, %v1885
    %v1982 = vunpack.c.l.s4 1983009808
    %v1983 = vunpack.c.0.s8 %v1982
    %v1984 = vlaneseq
    %v1985 = vshrl.u32 %v1984, 7
    %v1986 = vsub.s32 %v1983, %v1985
    %v1987 = vrot.slane %v1979, %v1986
    %v1989 = vunpack.c.l.s4 1983009808
    %v1990 = vunpack.c.0.s8 %v1989
    %v1991 = vlaneseq
    %v1992 = vshrl.u32 %v1991, 7
    %v1993 = vsub.s32 %v1990, %v1992
    %v1994 = vrot.slane %v1980, %v1993
    %v1995 = vcombine.low %v1987, %v1994
    %v1996 = vcombine.low %v1924, %v1926
    %v1997 = vcombine.low %v1965, %v1967
    %v1999 = vunpack.c.l.s4 1983009808
    %v2000 = vunpack.c.0.s8 %v1999
    %v2001 = vlaneseq
    %v2002 = vshrl.u32 %v2001, 7
    %v2003 = vsub.s32 %v2000, %v2002
    %v2004 = vrot.slane %v1996, %v2003
    %v2006 = vunpack.c.l.s4 1983009808
    %v2007 = vunpack.c.0.s8 %v2006
    %v2008 = vlaneseq
    %v2009 = vshrl.u32 %v2008, 7
    %v2010 = vsub.s32 %v2007, %v2009
    %v2011 = vrot.slane %v1997, %v2010
    %v2012 = vcombine.low %v2004, %v2011
    %2015 = vst [vmem:[#allocation2] sm:$0xff] %v1995
    %2016 = vst [vmem:[#allocation2 + $0x8] sm:$0xff] %v2012
    %2017 = vrot.lane.b32.xlu0 %v993, 16
    %v2018 = vpop.permute.xlu0 %2017
    %2021 = vrot.lane.b32.xlu0 %v1419, 16
    %v2022 = vpop.permute.xlu0 %2021
    %v2024 = vsel %vm1003, %v957, %v975
    %vm2025 = vcmask 130048
    %v2026 = vsel %vm2025, %v2024, %v2018
    %vm2027 = vcmask 195584
    %v2028 = vsel %vm2027, %v2026, %v2022
    %v2029 = vsel %vm918, %v2028, %v1441
    %vm2030 = vcmask 269312
    %v2031 = vsel %vm2030, %v2029, 0.0
    %2032 = vst [vmem:[#allocation4] sm:$0x3] %v2031
    // Predicated region
    $region82: #{tpu_custom_call.1} parent=1 // pred_check
      _
    $region83: #{tpu_custom_call.1} parent=1 // pred_check_branch
      %2034 = sbr.rel (0) target = $region85
    $region84: #{tpu_custom_call.1} parent=1 // pred_region
      %s2036 = ssub.s32 256, 256
      %2037 = vsyncadd [#allocation3], %s2036
      %s2039 = sshll.u32 [#allocation2], 4
      %s2040 = int_to_ptr.vmem [resolvable:$true] %s2039
      %2042 = dma.vmem_to_hbm [thread:$0]  %s2040, 256, %s20, [#allocation3]
    $region85: #{tpu_custom_call.1} parent=1 // pred_fallthru
      _
    // Predicated region
    $region86: #{tpu_custom_call.1} parent=1 // pred_check
      _
    $region87: #{tpu_custom_call.1} parent=1 // pred_check_branch
      %2044 = sbr.rel (0) target = $region89
    $region88: #{tpu_custom_call.1} parent=1 // pred_region
      %s2046 = ssub.s32 32, 32
      %2047 = vsyncadd [#allocation5], %s2046
      %s2049 = sshll.u32 [#allocation4], 4
      %s2050 = int_to_ptr.vmem [resolvable:$true] %s2049
      %2052 = dma.vmem_to_hbm [thread:$0]  %s2050, 32, %s21, [#allocation5]
    $region89: #{tpu_custom_call.1} parent=1 // pred_fallthru
      _
    // Predicated region
    $region90: #{tpu_custom_call.1} parent=1 // pred_check
      _
    $region91: #{tpu_custom_call.1} parent=1 // pred_check_branch
      %2054 = sbr.rel (0) target = $region93
    $region92: #{tpu_custom_call.1} parent=1 // pred_region
      %2055 = dma.done [#allocation3], 256
    $region93: #{tpu_custom_call.1} parent=1 // pred_fallthru
      _
    // Predicated region
    $region94: #{tpu_custom_call.1} parent=1 // pred_check
      _
    $region95: #{tpu_custom_call.1} parent=1 // pred_check_branch
      %2057 = sbr.rel (0) target = $region97
    $region96: #{tpu_custom_call.1} parent=1 // pred_region
      %2058 = dma.done [#allocation5], 32
    $region97: #{tpu_custom_call.1} parent=1 // pred_fallthru
      _
    %2059 = vsyncpa [#allocation3], 1
    %2060 = vsyncpa [#allocation5], 1

</llo_original>
